<compile_context>
chip_gen: v6e
topology: v6e:2x2x1
jax: 0.10.0
libtpu: 0.0.40
codegen_flags: <defaults>
</compile_context>

<pallas_src>
import jax
import jax.numpy as jnp
from jax import lax
from jax.experimental import pallas as pl
from jax.experimental.pallas import tpu as pltpu

BN_EPS = 1e-5


# ----------------------------------------------------------------------------
# Fused Pallas kernel: conv1 + 4 ResBlocks, one batch element per grid step
# ----------------------------------------------------------------------------
def _make_fused_kernel(cfgs, L):
    """cfgs: tuple of (K, dilation, relu) per conv layer, in execution order."""
    n = len(cfgs)
    n_res = (n - 1) // 3

    def kernel(*refs):
        # refs = (x, w0, s0, ..., w12, s12, out, pad_scratch)
        x_ref = refs[0]
        out_ref = refs[1 + 2 * n]
        pad_ref = refs[2 + 2 * n]                      # (C_pad, 3*L) f32 halo buffer

        # Zero once; afterwards only the centre columns [L, 2L) are written,
        # so the halo columns stay zero for every layer ("same" padding).
        pad_ref[...] = jnp.zeros_like(pad_ref)

        def conv(x, i):
            K, dil, relu = cfgs[i]
            w = refs[1 + 2 * i][...]                   # (C_out, K*C_in) bf16, BN scale folded
            shift = refs[2 + 2 * i][...]               # (C_out, 1) f32
            c_in = x.shape[0]
            if K == 1:
                cols = x
            else:
                pad_ref[0:c_in, L:2 * L] = x           # lane-aligned centre store
                xp = pad_ref[0:c_in, :]                # (C_in, 3L) zero-padded view
                p = (K - 1) // 2 * dil
                # im2col: stack the K shifted slices along sublanes.
                cols = jnp.concatenate(
                    [xp[:, L - p + j * dil: 2 * L - p + j * dil] for j in range(K)],
                    axis=0)                            # (K*C_in, L)
            acc = jnp.dot(w, cols.astype(jnp.bfloat16),
                          preferred_element_type=jnp.float32)
            acc = acc + shift                          # folded conv-bias + BN
            if relu:
                acc = jnp.maximum(acc, 0.0)
            return acc

        x = x_ref[0].astype(jnp.float32)               # (vocab, L)
        x = conv(x, 0)                                 # conv1 (ConvBlock, no ReLU)
        li = 1
        for _ in range(n_res):                         # 4 ResBlocks
            h = conv(x, li)
            h = conv(h, li + 1)
            h = conv(h, li + 2)
            # TODO(synk): Dropout(0.1) is identity in eval mode; training-mode
            # dropout and training-mode BatchNorm batch statistics not implemented.
            x = h + x
            li += 3
        out_ref[0] = x.astype(out_ref.dtype)

    return kernel


def cnn_autoencoder_forward(inp, params):
    """inp: (B, L, vocab) f32, same as the PyTorch module's `input`."""
    x = jnp.transpose(inp, (0, 2, 1))                  # permute(0, 2, 1) -> (B, vocab, L)
    B, C0, L = x.shape
    layers = params["flat_layers"]
    cfgs = tuple((l["K"], l["dilation"], l["relu"]) for l in layers)
    size = layers[-1]["w"].shape[0]
    # halo scratch rows = max C_in among the K=5 convs, rounded up to 8
    c_pad = max(C0, max(l["w"].shape[1] // l["K"] for l in layers if l["K"] > 1))
    c_pad = -(-c_pad // 8) * 8

    in_specs = [pl.BlockSpec((1, C0, L), lambda b: (b, 0, 0))]
    args = [x]
    for l in layers:
        in_specs.append(pl.BlockSpec(l["w"].shape, lambda b: (0, 0)))
        in_specs.append(pl.BlockSpec(l["shift"].shape, lambda b: (0, 0)))
        args += [l["w"], l["shift"]]

    return pl.pallas_call(
        _make_fused_kernel(cfgs, L),
        out_shape=jax.ShapeDtypeStruct((B, size, L), jnp.float32),
        grid_spec=pltpu.PrefetchScalarGridSpec(
            num_scalar_prefetch=0,
            grid=(B,),
            in_specs=in_specs,
            out_specs=pl.BlockSpec((1, size, L), lambda b: (b, 0, 0)),
            scratch_shapes=[pltpu.VMEM((c_pad, 3 * L), jnp.float32)],
        ),
        compiler_params=pltpu.CompilerParams(dimension_semantics=("parallel",)),
    )(*args)


# ----------------------------------------------------------------------------
# Parameter construction (deterministic, synthetic)
# ----------------------------------------------------------------------------
def init_conv_bn(key, c_in, c_out, ksize):
    kw, kb, kg, kbt, km, kv = jax.random.split(key, 6)
    fan_in = c_in * ksize
    w = jax.random.normal(kw, (ksize, c_out, c_in), jnp.float32) / jnp.sqrt(fan_in)
    b = 0.1 * jax.random.normal(kb, (c_out,), jnp.float32)
    gamma = 1.0 + 0.1 * jax.random.normal(kg, (c_out,), jnp.float32)
    beta = 0.1 * jax.random.normal(kbt, (c_out,), jnp.float32)
    mean = 0.1 * jax.random.normal(km, (c_out,), jnp.float32)
    var = 1.0 + 0.1 * jax.random.uniform(kv, (c_out,), jnp.float32)
    scale = gamma / jnp.sqrt(var + BN_EPS)
    shift = beta + scale * (b - mean)
    # im2col weight layout (C_out, K*C_in), row index = j*C_in + c (matches the
    # kernel's sublane-stacked shifted slices); BN scale folded into the weight.
    w_im2col = jnp.transpose(w * scale[None, :, None], (1, 0, 2)).reshape(
        c_out, ksize * c_in)
    return {
        "w_im2col": w_im2col.astype(jnp.bfloat16),
        "shift": shift[:, None],
        # raw params kept only for the XLA reference check:
        "w": w, "b": b, "gamma": gamma, "beta": beta, "mean": mean, "var": var,
    }


def init_params(key, size, vocab):
    keys = jax.random.split(key, 16)
    params = {"conv1": init_conv_bn(keys[0], vocab, size, 5), "encoder": []}
    # ResBlock(size, size//2, dil=2), (size, size//4, dil=4),
    # (size, size//2, dil=2), (size, size//2, dil=4)
    cfg = [(size // 2, 2), (size // 4, 4), (size // 2, 2), (size // 2, 4)]
    ki = 1
    for c_mid, dil in cfg:
        params["encoder"].append({
            "dilation": dil,
            "c1": init_conv_bn(keys[ki + 0], size, c_mid, 1),
            "c2": init_conv_bn(keys[ki + 1], c_mid, c_mid, 5),
            "c3": init_conv_bn(keys[ki + 2], c_mid, size, 1),
        })
        ki += 3
    # Flat per-conv layer list in execution order for the fused kernel.
    flat = [{"w": params["conv1"]["w_im2col"], "shift": params["conv1"]["shift"],
             "K": 5, "dilation": 1, "relu": False}]
    for rb in params["encoder"]:
        d = rb["dilation"]
        flat.append({"w": rb["c1"]["w_im2col"], "shift": rb["c1"]["shift"],
                     "K": 1, "dilation": 1, "relu": True})
        flat.append({"w": rb["c2"]["w_im2col"], "shift": rb["c2"]["shift"],
                     "K": 5, "dilation": d, "relu": True})
        flat.append({"w": rb["c3"]["w_im2col"], "shift": rb["c3"]["shift"],
                     "K": 1, "dilation": 1, "relu": True})
    params["flat_layers"] = flat
    # NOTE: `classifier` and `indirect` ConvBlocks exist in __init__ but are
    # unused by forward(), so they are not materialized here.
    return params


# ----------------------------------------------------------------------------
# Pure-XLA reference for the correctness check
# ----------------------------------------------------------------------------
def _ref_conv_bn(x, p, ksize, dilation, relu, residual=None):
    w = jnp.transpose(p["w"], (1, 2, 0))               # (C_out, C_in, K) OIH
    pad = (ksize - 1) // 2 * dilation
    y = lax.conv_general_dilated(
        x, w, window_strides=(1,), padding=[(pad, pad)], rhs_dilation=(dilation,),
        dimension_numbers=("NCH", "OIH", "NCH"), precision=lax.Precision.HIGHEST)
    y = y + p["b"][None, :, None]
    y = (y - p["mean"][None, :, None]) * (
        p["gamma"][None, :, None] / jnp.sqrt(p["var"][None, :, None] + BN_EPS))
    y = y + p["beta"][None, :, None]
    if relu:
        y = jnp.maximum(y, 0.0)
    if residual is not None:
        y = y + residual
    return y


def cnn_autoencoder_reference(inp, params):
    x = jnp.transpose(inp, (0, 2, 1))
    x = _ref_conv_bn(x, params["conv1"], 5, 1, relu=False)
    for rb in params["encoder"]:
        d = rb["dilation"]
        h = _ref_conv_bn(x, rb["c1"], 1, 1, relu=True)
        h = _ref_conv_bn(h, rb["c2"], 5, d, relu=True)
        x = _ref_conv_bn(h, rb["c3"], 1, 1, relu=True, residual=x)
    return x


if __name__ == "__main__":
    B, L, VOCAB, SIZE = 2, 128, 16, 32
    key = jax.random.PRNGKey(0)
    k_inp, k_par = jax.random.split(key)
    inp = jax.random.normal(k_inp, (B, L, VOCAB), jnp.float32)
    params = init_params(k_par, SIZE, VOCAB)

    out = jax.block_until_ready(cnn_autoencoder_forward(inp, params))
    ref = jax.block_until_ready(cnn_autoencoder_reference(inp, params))

    assert out.shape == (B, SIZE, L), out.shape
    max_err = float(jnp.max(jnp.abs(out - ref)))
    ref_scale = float(jnp.max(jnp.abs(ref)))
    # bf16 MXU operands (default precision) across 13 fused layers, compared
    # against an f32 HIGHEST-precision XLA reference.
    assert max_err < 5e-2 * ref_scale + 1e-3, (
        f"mismatch vs reference: max_err={max_err} ref_scale={ref_scale}")
    print("KERNEL_OK")
</pallas_src>

<mosaic_0001>
module attributes {stable_mosaic.version = 11 : i64} {
  func.func @kernel(%arg0: i32, %arg1: memref<1x16x128xf32, #tpu.memory_space<vmem>>, %arg2: memref<32x80xbf16, #tpu.memory_space<vmem>>, %arg3: memref<32x1xf32, #tpu.memory_space<vmem>>, %arg4: memref<16x32xbf16, #tpu.memory_space<vmem>>, %arg5: memref<16x1xf32, #tpu.memory_space<vmem>>, %arg6: memref<16x80xbf16, #tpu.memory_space<vmem>>, %arg7: memref<16x1xf32, #tpu.memory_space<vmem>>, %arg8: memref<32x16xbf16, #tpu.memory_space<vmem>>, %arg9: memref<32x1xf32, #tpu.memory_space<vmem>>, %arg10: memref<8x32xbf16, #tpu.memory_space<vmem>>, %arg11: memref<8x1xf32, #tpu.memory_space<vmem>>, %arg12: memref<8x40xbf16, #tpu.memory_space<vmem>>, %arg13: memref<8x1xf32, #tpu.memory_space<vmem>>, %arg14: memref<32x8xbf16, #tpu.memory_space<vmem>>, %arg15: memref<32x1xf32, #tpu.memory_space<vmem>>, %arg16: memref<16x32xbf16, #tpu.memory_space<vmem>>, %arg17: memref<16x1xf32, #tpu.memory_space<vmem>>, %arg18: memref<16x80xbf16, #tpu.memory_space<vmem>>, %arg19: memref<16x1xf32, #tpu.memory_space<vmem>>, %arg20: memref<32x16xbf16, #tpu.memory_space<vmem>>, %arg21: memref<32x1xf32, #tpu.memory_space<vmem>>, %arg22: memref<16x32xbf16, #tpu.memory_space<vmem>>, %arg23: memref<16x1xf32, #tpu.memory_space<vmem>>, %arg24: memref<16x80xbf16, #tpu.memory_space<vmem>>, %arg25: memref<16x1xf32, #tpu.memory_space<vmem>>, %arg26: memref<32x16xbf16, #tpu.memory_space<vmem>>, %arg27: memref<32x1xf32, #tpu.memory_space<vmem>>, %arg28: memref<1x32x128xf32, #tpu.memory_space<vmem>>, %arg29: memref<16x384xf32, #tpu.memory_space<vmem>>) attributes {dimension_semantics = [#tpu.dimension_semantics<parallel>], iteration_bounds = array<i64: 2>, scalar_prefetch = 0 : i64, scratch_operands = 1 : i64, tpu.core_type = #tpu.core_type<tc>, window_params = [{transform_indices = @transform_0, window_bounds = array<i64: 1, 16, 128>}, {pipeline_mode = #tpu.pipeline_mode<synchronous>, transform_indices = @transform_1, window_bounds = array<i64: 32, 80>}, {pipeline_mode = #tpu.pipeline_mode<synchronous>, transform_indices = @transform_2, window_bounds = array<i64: 32, 1>}, {pipeline_mode = #tpu.pipeline_mode<synchronous>, transform_indices = @transform_3, window_bounds = array<i64: 16, 32>}, {pipeline_mode = #tpu.pipeline_mode<synchronous>, transform_indices = @transform_4, window_bounds = array<i64: 16, 1>}, {pipeline_mode = #tpu.pipeline_mode<synchronous>, transform_indices = @transform_5, window_bounds = array<i64: 16, 80>}, {pipeline_mode = #tpu.pipeline_mode<synchronous>, transform_indices = @transform_6, window_bounds = array<i64: 16, 1>}, {pipeline_mode = #tpu.pipeline_mode<synchronous>, transform_indices = @transform_7, window_bounds = array<i64: 32, 16>}, {pipeline_mode = #tpu.pipeline_mode<synchronous>, transform_indices = @transform_8, window_bounds = array<i64: 32, 1>}, {pipeline_mode = #tpu.pipeline_mode<synchronous>, transform_indices = @transform_9, window_bounds = array<i64: 8, 32>}, {pipeline_mode = #tpu.pipeline_mode<synchronous>, transform_indices = @transform_10, window_bounds = array<i64: 8, 1>}, {pipeline_mode = #tpu.pipeline_mode<synchronous>, transform_indices = @transform_11, window_bounds = array<i64: 8, 40>}, {pipeline_mode = #tpu.pipeline_mode<synchronous>, transform_indices = @transform_12, window_bounds = array<i64: 8, 1>}, {pipeline_mode = #tpu.pipeline_mode<synchronous>, transform_indices = @transform_13, window_bounds = array<i64: 32, 8>}, {pipeline_mode = #tpu.pipeline_mode<synchronous>, transform_indices = @transform_14, window_bounds = array<i64: 32, 1>}, {pipeline_mode = #tpu.pipeline_mode<synchronous>, transform_indices = @transform_15, window_bounds = array<i64: 16, 32>}, {pipeline_mode = #tpu.pipeline_mode<synchronous>, transform_indices = @transform_16, window_bounds = array<i64: 16, 1>}, {pipeline_mode = #tpu.pipeline_mode<synchronous>, transform_indices = @transform_17, window_bounds = array<i64: 16, 80>}, {pipeline_mode = #tpu.pipeline_mode<synchronous>, transform_indices = @transform_18, window_bounds = array<i64: 16, 1>}, {pipeline_mode = #tpu.pipeline_mode<synchronous>, transform_indices = @transform_19, window_bounds = array<i64: 32, 16>}, {pipeline_mode = #tpu.pipeline_mode<synchronous>, transform_indices = @transform_20, window_bounds = array<i64: 32, 1>}, {pipeline_mode = #tpu.pipeline_mode<synchronous>, transform_indices = @transform_21, window_bounds = array<i64: 16, 32>}, {pipeline_mode = #tpu.pipeline_mode<synchronous>, transform_indices = @transform_22, window_bounds = array<i64: 16, 1>}, {pipeline_mode = #tpu.pipeline_mode<synchronous>, transform_indices = @transform_23, window_bounds = array<i64: 16, 80>}, {pipeline_mode = #tpu.pipeline_mode<synchronous>, transform_indices = @transform_24, window_bounds = array<i64: 16, 1>}, {pipeline_mode = #tpu.pipeline_mode<synchronous>, transform_indices = @transform_25, window_bounds = array<i64: 32, 16>}, {pipeline_mode = #tpu.pipeline_mode<synchronous>, transform_indices = @transform_26, window_bounds = array<i64: 32, 1>}, {transform_indices = @transform_27, window_bounds = array<i64: 1, 32, 128>}]} {
    %cst = arith.constant 0.000000e+00 : f32
    %0 = vector.broadcast %cst : f32 to vector<16x384xf32>
    %c0 = arith.constant 0 : index
    %c0_0 = arith.constant 0 : index
    %1 = vector.load %arg29[%c0, %c0_0] : memref<16x384xf32, #tpu.memory_space<vmem>>, vector<16x384xf32>
    tpu.vector_store %arg29[%c0, %c0_0], %0 {strides = array<i32>} : memref<16x384xf32, #tpu.memory_space<vmem>>, vector<16x384xf32>,
    %c0_1 = arith.constant 0 : index
    %c0_2 = arith.constant 0 : index
    %c0_3 = arith.constant 0 : index
    %2 = vector.load %arg1[%c0_1, %c0_2, %c0_3] : memref<1x16x128xf32, #tpu.memory_space<vmem>>, vector<1x16x128xf32>
    %3 = vector.shape_cast %2 : vector<1x16x128xf32> to vector<16x128xf32>
    %c0_4 = arith.constant 0 : index
    %c0_5 = arith.constant 0 : index
    %4 = vector.load %arg2[%c0_4, %c0_5] : memref<32x80xbf16, #tpu.memory_space<vmem>>, vector<32x80xbf16>
    %c0_6 = arith.constant 0 : index
    %c0_7 = arith.constant 0 : index
    %5 = vector.load %arg3[%c0_6, %c0_7] : memref<32x1xf32, #tpu.memory_space<vmem>>, vector<32x1xf32>
    %c0_8 = arith.constant 0 : index
    %c128 = arith.constant 128 : index
    %6 = vector.load %arg29[%c0_8, %c128] : memref<16x384xf32, #tpu.memory_space<vmem>>, vector<16x128xf32>
    tpu.vector_store %arg29[%c0_8, %c128], %3 {strides = array<i32>} : memref<16x384xf32, #tpu.memory_space<vmem>>, vector<16x128xf32>,
    %c0_9 = arith.constant 0 : index
    %c0_10 = arith.constant 0 : index
    %7 = vector.load %arg29[%c0_9, %c0_10] : memref<16x384xf32, #tpu.memory_space<vmem>>, vector<16x384xf32>
    %8 = vector.extract_strided_slice %7 {offsets = [0, 126], sizes = [16, 128], strides = [1, 1]} : vector<16x384xf32> to vector<16x128xf32>
    %9 = vector.extract_strided_slice %7 {offsets = [0, 127], sizes = [16, 128], strides = [1, 1]} : vector<16x384xf32> to vector<16x128xf32>
    %10 = vector.extract_strided_slice %7 {offsets = [0, 128], sizes = [16, 128], strides = [1, 1]} : vector<16x384xf32> to vector<16x128xf32>
    %11 = vector.extract_strided_slice %7 {offsets = [0, 129], sizes = [16, 128], strides = [1, 1]} : vector<16x384xf32> to vector<16x128xf32>
    %12 = vector.extract_strided_slice %7 {offsets = [0, 130], sizes = [16, 128], strides = [1, 1]} : vector<16x384xf32> to vector<16x128xf32>
    %13 = tpu.concatenate %8, %9, %10, %11, %12 in 0 : vector<16x128xf32>, vector<16x128xf32>, vector<16x128xf32>, vector<16x128xf32>, vector<16x128xf32> -> vector<80x128xf32>
    %14 = arith.truncf %13 : vector<80x128xf32> to vector<80x128xbf16>
    %cst_11 = arith.constant dense<0.000000e+00> : vector<32x128xf32>
    %15 = tpu.matmul %4, %14, %cst_11 {dimension_numbers = #tpu.dot_dimension_numbers<[1], [0], [0], [1], [0, 0, 1, 1], [], []>} : vector<32x80xbf16>, vector<80x128xbf16>, vector<32x128xf32> -> vector<32x128xf32>
    %16 = vector.broadcast %5 : vector<32x1xf32> to vector<32x128xf32>
    %17 = arith.addf %15, %16 : vector<32x128xf32>
    %c0_12 = arith.constant 0 : index
    %c0_13 = arith.constant 0 : index
    %18 = vector.load %arg4[%c0_12, %c0_13] : memref<16x32xbf16, #tpu.memory_space<vmem>>, vector<16x32xbf16>
    %c0_14 = arith.constant 0 : index
    %c0_15 = arith.constant 0 : index
    %19 = vector.load %arg5[%c0_14, %c0_15] : memref<16x1xf32, #tpu.memory_space<vmem>>, vector<16x1xf32>
    %20 = arith.truncf %17 : vector<32x128xf32> to vector<32x128xbf16>
    %cst_16 = arith.constant dense<0.000000e+00> : vector<16x128xf32>
    %21 = tpu.matmul %18, %20, %cst_16 {dimension_numbers = #tpu.dot_dimension_numbers<[1], [0], [0], [1], [0, 0, 1, 1], [], []>} : vector<16x32xbf16>, vector<32x128xbf16>, vector<16x128xf32> -> vector<16x128xf32>
    %22 = vector.broadcast %19 : vector<16x1xf32> to vector<16x128xf32>
    %23 = arith.addf %21, %22 : vector<16x128xf32>
    %cst_17 = arith.constant 0.000000e+00 : f32
    %24 = vector.broadcast %cst_17 : f32 to vector<16x128xf32>
    %25 = arith.maximumf %23, %24 : vector<16x128xf32>
    %c0_18 = arith.constant 0 : index
    %c0_19 = arith.constant 0 : index
    %26 = vector.load %arg6[%c0_18, %c0_19] : memref<16x80xbf16, #tpu.memory_space<vmem>>, vector<16x80xbf16>
    %c0_20 = arith.constant 0 : index
    %c0_21 = arith.constant 0 : index
    %27 = vector.load %arg7[%c0_20, %c0_21] : memref<16x1xf32, #tpu.memory_space<vmem>>, vector<16x1xf32>
    %c0_22 = arith.constant 0 : index
    %c128_23 = arith.constant 128 : index
    %28 = vector.load %arg29[%c0_22, %c128_23] : memref<16x384xf32, #tpu.memory_space<vmem>>, vector<16x128xf32>
    tpu.vector_store %arg29[%c0_22, %c128_23], %25 {strides = array<i32>} : memref<16x384xf32, #tpu.memory_space<vmem>>, vector<16x128xf32>,
    %c0_24 = arith.constant 0 : index
    %c0_25 = arith.constant 0 : index
    %29 = vector.load %arg29[%c0_24, %c0_25] : memref<16x384xf32, #tpu.memory_space<vmem>>, vector<16x384xf32>
    %30 = vector.extract_strided_slice %29 {offsets = [0, 124], sizes = [16, 128], strides = [1, 1]} : vector<16x384xf32> to vector<16x128xf32>
    %31 = vector.extract_strided_slice %29 {offsets = [0, 126], sizes = [16, 128], strides = [1, 1]} : vector<16x384xf32> to vector<16x128xf32>
    %32 = vector.extract_strided_slice %29 {offsets = [0, 128], sizes = [16, 128], strides = [1, 1]} : vector<16x384xf32> to vector<16x128xf32>
    %33 = vector.extract_strided_slice %29 {offsets = [0, 130], sizes = [16, 128], strides = [1, 1]} : vector<16x384xf32> to vector<16x128xf32>
    %34 = vector.extract_strided_slice %29 {offsets = [0, 132], sizes = [16, 128], strides = [1, 1]} : vector<16x384xf32> to vector<16x128xf32>
    %35 = tpu.concatenate %30, %31, %32, %33, %34 in 0 : vector<16x128xf32>, vector<16x128xf32>, vector<16x128xf32>, vector<16x128xf32>, vector<16x128xf32> -> vector<80x128xf32>
    %36 = arith.truncf %35 : vector<80x128xf32> to vector<80x128xbf16>
    %cst_26 = arith.constant dense<0.000000e+00> : vector<16x128xf32>
    %37 = tpu.matmul %26, %36, %cst_26 {dimension_numbers = #tpu.dot_dimension_numbers<[1], [0], [0], [1], [0, 0, 1, 1], [], []>} : vector<16x80xbf16>, vector<80x128xbf16>, vector<16x128xf32> -> vector<16x128xf32>
    %38 = vector.broadcast %27 : vector<16x1xf32> to vector<16x128xf32>
    %39 = arith.addf %37, %38 : vector<16x128xf32>
    %cst_27 = arith.constant 0.000000e+00 : f32
    %40 = vector.broadcast %cst_27 : f32 to vector<16x128xf32>
    %41 = arith.maximumf %39, %40 : vector<16x128xf32>
    %c0_28 = arith.constant 0 : index
    %c0_29 = arith.constant 0 : index
    %42 = vector.load %arg8[%c0_28, %c0_29] : memref<32x16xbf16, #tpu.memory_space<vmem>>, vector<32x16xbf16>
    %c0_30 = arith.constant 0 : index
    %c0_31 = arith.constant 0 : index
    %43 = vector.load %arg9[%c0_30, %c0_31] : memref<32x1xf32, #tpu.memory_space<vmem>>, vector<32x1xf32>
    %44 = arith.truncf %41 : vector<16x128xf32> to vector<16x128xbf16>
    %cst_32 = arith.constant dense<0.000000e+00> : vector<32x128xf32>
    %45 = tpu.matmul %42, %44, %cst_32 {dimension_numbers = #tpu.dot_dimension_numbers<[1], [0], [0], [1], [0, 0, 1, 1], [], []>} : vector<32x16xbf16>, vector<16x128xbf16>, vector<32x128xf32> -> vector<32x128xf32>
    %46 = vector.broadcast %43 : vector<32x1xf32> to vector<32x128xf32>
    %47 = arith.addf %45, %46 : vector<32x128xf32>
    %cst_33 = arith.constant 0.000000e+00 : f32
    %48 = vector.broadcast %cst_33 : f32 to vector<32x128xf32>
    %49 = arith.maximumf %47, %48 : vector<32x128xf32>
    %50 = arith.addf %49, %17 : vector<32x128xf32>
    %c0_34 = arith.constant 0 : index
    %c0_35 = arith.constant 0 : index
    %51 = vector.load %arg10[%c0_34, %c0_35] : memref<8x32xbf16, #tpu.memory_space<vmem>>, vector<8x32xbf16>
    %c0_36 = arith.constant 0 : index
    %c0_37 = arith.constant 0 : index
    %52 = vector.load %arg11[%c0_36, %c0_37] : memref<8x1xf32, #tpu.memory_space<vmem>>, vector<8x1xf32>
    %53 = arith.truncf %50 : vector<32x128xf32> to vector<32x128xbf16>
    %cst_38 = arith.constant dense<0.000000e+00> : vector<8x128xf32>
    %54 = tpu.matmul %51, %53, %cst_38 {dimension_numbers = #tpu.dot_dimension_numbers<[1], [0], [0], [1], [0, 0, 1, 1], [], []>} : vector<8x32xbf16>, vector<32x128xbf16>, vector<8x128xf32> -> vector<8x128xf32>
    %55 = vector.broadcast %52 : vector<8x1xf32> to vector<8x128xf32>
    %56 = arith.addf %54, %55 : vector<8x128xf32>
    %cst_39 = arith.constant 0.000000e+00 : f32
    %57 = vector.broadcast %cst_39 : f32 to vector<8x128xf32>
    %58 = arith.maximumf %56, %57 : vector<8x128xf32>
    %c0_40 = arith.constant 0 : index
    %c0_41 = arith.constant 0 : index
    %59 = vector.load %arg12[%c0_40, %c0_41] : memref<8x40xbf16, #tpu.memory_space<vmem>>, vector<8x40xbf16>
    %c0_42 = arith.constant 0 : index
    %c0_43 = arith.constant 0 : index
    %60 = vector.load %arg13[%c0_42, %c0_43] : memref<8x1xf32, #tpu.memory_space<vmem>>, vector<8x1xf32>
    %c0_44 = arith.constant 0 : index
    %c128_45 = arith.constant 128 : index
    %61 = vector.load %arg29[%c0_44, %c128_45] : memref<16x384xf32, #tpu.memory_space<vmem>>, vector<8x128xf32>
    tpu.vector_store %arg29[%c0_44, %c128_45], %58 {strides = array<i32>} : memref<16x384xf32, #tpu.memory_space<vmem>>, vector<8x128xf32>,
    %c0_46 = arith.constant 0 : index
    %c0_47 = arith.constant 0 : index
    %62 = vector.load %arg29[%c0_46, %c0_47] : memref<16x384xf32, #tpu.memory_space<vmem>>, vector<8x384xf32>
    %63 = vector.extract_strided_slice %62 {offsets = [0, 120], sizes = [8, 128], strides = [1, 1]} : vector<8x384xf32> to vector<8x128xf32>
    %64 = vector.extract_strided_slice %62 {offsets = [0, 124], sizes = [8, 128], strides = [1, 1]} : vector<8x384xf32> to vector<8x128xf32>
    %65 = vector.extract_strided_slice %62 {offsets = [0, 128], sizes = [8, 128], strides = [1, 1]} : vector<8x384xf32> to vector<8x128xf32>
    %66 = vector.extract_strided_slice %62 {offsets = [0, 132], sizes = [8, 128], strides = [1, 1]} : vector<8x384xf32> to vector<8x128xf32>
    %67 = vector.extract_strided_slice %62 {offsets = [0, 136], sizes = [8, 128], strides = [1, 1]} : vector<8x384xf32> to vector<8x128xf32>
    %68 = tpu.concatenate %63, %64, %65, %66, %67 in 0 : vector<8x128xf32>, vector<8x128xf32>, vector<8x128xf32>, vector<8x128xf32>, vector<8x128xf32> -> vector<40x128xf32>
    %69 = arith.truncf %68 : vector<40x128xf32> to vector<40x128xbf16>
    %cst_48 = arith.constant dense<0.000000e+00> : vector<8x128xf32>
    %70 = tpu.matmul %59, %69, %cst_48 {dimension_numbers = #tpu.dot_dimension_numbers<[1], [0], [0], [1], [0, 0, 1, 1], [], []>} : vector<8x40xbf16>, vector<40x128xbf16>, vector<8x128xf32> -> vector<8x128xf32>
    %71 = vector.broadcast %60 : vector<8x1xf32> to vector<8x128xf32>
    %72 = arith.addf %70, %71 : vector<8x128xf32>
    %cst_49 = arith.constant 0.000000e+00 : f32
    %73 = vector.broadcast %cst_49 : f32 to vector<8x128xf32>
    %74 = arith.maximumf %72, %73 : vector<8x128xf32>
    %c0_50 = arith.constant 0 : index
    %c0_51 = arith.constant 0 : index
    %75 = vector.load %arg14[%c0_50, %c0_51] : memref<32x8xbf16, #tpu.memory_space<vmem>>, vector<32x8xbf16>
    %c0_52 = arith.constant 0 : index
    %c0_53 = arith.constant 0 : index
    %76 = vector.load %arg15[%c0_52, %c0_53] : memref<32x1xf32, #tpu.memory_space<vmem>>, vector<32x1xf32>
    %77 = arith.truncf %74 : vector<8x128xf32> to vector<8x128xbf16>
    %cst_54 = arith.constant dense<0.000000e+00> : vector<32x128xf32>
    %78 = tpu.matmul %75, %77, %cst_54 {dimension_numbers = #tpu.dot_dimension_numbers<[1], [0], [0], [1], [0, 0, 1, 1], [], []>} : vector<32x8xbf16>, vector<8x128xbf16>, vector<32x128xf32> -> vector<32x128xf32>
    %79 = vector.broadcast %76 : vector<32x1xf32> to vector<32x128xf32>
    %80 = arith.addf %78, %79 : vector<32x128xf32>
    %cst_55 = arith.constant 0.000000e+00 : f32
    %81 = vector.broadcast %cst_55 : f32 to vector<32x128xf32>
    %82 = arith.maximumf %80, %81 : vector<32x128xf32>
    %83 = arith.addf %82, %50 : vector<32x128xf32>
    %c0_56 = arith.constant 0 : index
    %c0_57 = arith.constant 0 : index
    %84 = vector.load %arg16[%c0_56, %c0_57] : memref<16x32xbf16, #tpu.memory_space<vmem>>, vector<16x32xbf16>
    %c0_58 = arith.constant 0 : index
    %c0_59 = arith.constant 0 : index
    %85 = vector.load %arg17[%c0_58, %c0_59] : memref<16x1xf32, #tpu.memory_space<vmem>>, vector<16x1xf32>
    %86 = arith.truncf %83 : vector<32x128xf32> to vector<32x128xbf16>
    %cst_60 = arith.constant dense<0.000000e+00> : vector<16x128xf32>
    %87 = tpu.matmul %84, %86, %cst_60 {dimension_numbers = #tpu.dot_dimension_numbers<[1], [0], [0], [1], [0, 0, 1, 1], [], []>} : vector<16x32xbf16>, vector<32x128xbf16>, vector<16x128xf32> -> vector<16x128xf32>
    %88 = vector.broadcast %85 : vector<16x1xf32> to vector<16x128xf32>
    %89 = arith.addf %87, %88 : vector<16x128xf32>
    %cst_61 = arith.constant 0.000000e+00 : f32
    %90 = vector.broadcast %cst_61 : f32 to vector<16x128xf32>
    %91 = arith.maximumf %89, %90 : vector<16x128xf32>
    %c0_62 = arith.constant 0 : index
    %c0_63 = arith.constant 0 : index
    %92 = vector.load %arg18[%c0_62, %c0_63] : memref<16x80xbf16, #tpu.memory_space<vmem>>, vector<16x80xbf16>
    %c0_64 = arith.constant 0 : index
    %c0_65 = arith.constant 0 : index
    %93 = vector.load %arg19[%c0_64, %c0_65] : memref<16x1xf32, #tpu.memory_space<vmem>>, vector<16x1xf32>
    %c0_66 = arith.constant 0 : index
    %c128_67 = arith.constant 128 : index
    %94 = vector.load %arg29[%c0_66, %c128_67] : memref<16x384xf32, #tpu.memory_space<vmem>>, vector<16x128xf32>
    tpu.vector_store %arg29[%c0_66, %c128_67], %91 {strides = array<i32>} : memref<16x384xf32, #tpu.memory_space<vmem>>, vector<16x128xf32>,
    %c0_68 = arith.constant 0 : index
    %c0_69 = arith.constant 0 : index
    %95 = vector.load %arg29[%c0_68, %c0_69] : memref<16x384xf32, #tpu.memory_space<vmem>>, vector<16x384xf32>
    %96 = vector.extract_strided_slice %95 {offsets = [0, 124], sizes = [16, 128], strides = [1, 1]} : vector<16x384xf32> to vector<16x128xf32>
    %97 = vector.extract_strided_slice %95 {offsets = [0, 126], sizes = [16, 128], strides = [1, 1]} : vector<16x384xf32> to vector<16x128xf32>
    %98 = vector.extract_strided_slice %95 {offsets = [0, 128], sizes = [16, 128], strides = [1, 1]} : vector<16x384xf32> to vector<16x128xf32>
    %99 = vector.extract_strided_slice %95 {offsets = [0, 130], sizes = [16, 128], strides = [1, 1]} : vector<16x384xf32> to vector<16x128xf32>
    %100 = vector.extract_strided_slice %95 {offsets = [0, 132], sizes = [16, 128], strides = [1, 1]} : vector<16x384xf32> to vector<16x128xf32>
    %101 = tpu.concatenate %96, %97, %98, %99, %100 in 0 : vector<16x128xf32>, vector<16x128xf32>, vector<16x128xf32>, vector<16x128xf32>, vector<16x128xf32> -> vector<80x128xf32>
    %102 = arith.truncf %101 : vector<80x128xf32> to vector<80x128xbf16>
    %cst_70 = arith.constant dense<0.000000e+00> : vector<16x128xf32>
    %103 = tpu.matmul %92, %102, %cst_70 {dimension_numbers = #tpu.dot_dimension_numbers<[1], [0], [0], [1], [0, 0, 1, 1], [], []>} : vector<16x80xbf16>, vector<80x128xbf16>, vector<16x128xf32> -> vector<16x128xf32>
    %104 = vector.broadcast %93 : vector<16x1xf32> to vector<16x128xf32>
    %105 = arith.addf %103, %104 : vector<16x128xf32>
    %cst_71 = arith.constant 0.000000e+00 : f32
    %106 = vector.broadcast %cst_71 : f32 to vector<16x128xf32>
    %107 = arith.maximumf %105, %106 : vector<16x128xf32>
    %c0_72 = arith.constant 0 : index
    %c0_73 = arith.constant 0 : index
    %108 = vector.load %arg20[%c0_72, %c0_73] : memref<32x16xbf16, #tpu.memory_space<vmem>>, vector<32x16xbf16>
    %c0_74 = arith.constant 0 : index
    %c0_75 = arith.constant 0 : index
    %109 = vector.load %arg21[%c0_74, %c0_75] : memref<32x1xf32, #tpu.memory_space<vmem>>, vector<32x1xf32>
    %110 = arith.truncf %107 : vector<16x128xf32> to vector<16x128xbf16>
    %cst_76 = arith.constant dense<0.000000e+00> : vector<32x128xf32>
    %111 = tpu.matmul %108, %110, %cst_76 {dimension_numbers = #tpu.dot_dimension_numbers<[1], [0], [0], [1], [0, 0, 1, 1], [], []>} : vector<32x16xbf16>, vector<16x128xbf16>, vector<32x128xf32> -> vector<32x128xf32>
    %112 = vector.broadcast %109 : vector<32x1xf32> to vector<32x128xf32>
    %113 = arith.addf %111, %112 : vector<32x128xf32>
    %cst_77 = arith.constant 0.000000e+00 : f32
    %114 = vector.broadcast %cst_77 : f32 to vector<32x128xf32>
    %115 = arith.maximumf %113, %114 : vector<32x128xf32>
    %116 = arith.addf %115, %83 : vector<32x128xf32>
    %c0_78 = arith.constant 0 : index
    %c0_79 = arith.constant 0 : index
    %117 = vector.load %arg22[%c0_78, %c0_79] : memref<16x32xbf16, #tpu.memory_space<vmem>>, vector<16x32xbf16>
    %c0_80 = arith.constant 0 : index
    %c0_81 = arith.constant 0 : index
    %118 = vector.load %arg23[%c0_80, %c0_81] : memref<16x1xf32, #tpu.memory_space<vmem>>, vector<16x1xf32>
    %119 = arith.truncf %116 : vector<32x128xf32> to vector<32x128xbf16>
    %cst_82 = arith.constant dense<0.000000e+00> : vector<16x128xf32>
    %120 = tpu.matmul %117, %119, %cst_82 {dimension_numbers = #tpu.dot_dimension_numbers<[1], [0], [0], [1], [0, 0, 1, 1], [], []>} : vector<16x32xbf16>, vector<32x128xbf16>, vector<16x128xf32> -> vector<16x128xf32>
    %121 = vector.broadcast %118 : vector<16x1xf32> to vector<16x128xf32>
    %122 = arith.addf %120, %121 : vector<16x128xf32>
    %cst_83 = arith.constant 0.000000e+00 : f32
    %123 = vector.broadcast %cst_83 : f32 to vector<16x128xf32>
    %124 = arith.maximumf %122, %123 : vector<16x128xf32>
    %c0_84 = arith.constant 0 : index
    %c0_85 = arith.constant 0 : index
    %125 = vector.load %arg24[%c0_84, %c0_85] : memref<16x80xbf16, #tpu.memory_space<vmem>>, vector<16x80xbf16>
    %c0_86 = arith.constant 0 : index
    %c0_87 = arith.constant 0 : index
    %126 = vector.load %arg25[%c0_86, %c0_87] : memref<16x1xf32, #tpu.memory_space<vmem>>, vector<16x1xf32>
    %c0_88 = arith.constant 0 : index
    %c128_89 = arith.constant 128 : index
    %127 = vector.load %arg29[%c0_88, %c128_89] : memref<16x384xf32, #tpu.memory_space<vmem>>, vector<16x128xf32>
    tpu.vector_store %arg29[%c0_88, %c128_89], %124 {strides = array<i32>} : memref<16x384xf32, #tpu.memory_space<vmem>>, vector<16x128xf32>,
    %c0_90 = arith.constant 0 : index
    %c0_91 = arith.constant 0 : index
    %128 = vector.load %arg29[%c0_90, %c0_91] : memref<16x384xf32, #tpu.memory_space<vmem>>, vector<16x384xf32>
    %129 = vector.extract_strided_slice %128 {offsets = [0, 120], sizes = [16, 128], strides = [1, 1]} : vector<16x384xf32> to vector<16x128xf32>
    %130 = vector.extract_strided_slice %128 {offsets = [0, 124], sizes = [16, 128], strides = [1, 1]} : vector<16x384xf32> to vector<16x128xf32>
    %131 = vector.extract_strided_slice %128 {offsets = [0, 128], sizes = [16, 128], strides = [1, 1]} : vector<16x384xf32> to vector<16x128xf32>
    %132 = vector.extract_strided_slice %128 {offsets = [0, 132], sizes = [16, 128], strides = [1, 1]} : vector<16x384xf32> to vector<16x128xf32>
    %133 = vector.extract_strided_slice %128 {offsets = [0, 136], sizes = [16, 128], strides = [1, 1]} : vector<16x384xf32> to vector<16x128xf32>
    %134 = tpu.concatenate %129, %130, %131, %132, %133 in 0 : vector<16x128xf32>, vector<16x128xf32>, vector<16x128xf32>, vector<16x128xf32>, vector<16x128xf32> -> vector<80x128xf32>
    %135 = arith.truncf %134 : vector<80x128xf32> to vector<80x128xbf16>
    %cst_92 = arith.constant dense<0.000000e+00> : vector<16x128xf32>
    %136 = tpu.matmul %125, %135, %cst_92 {dimension_numbers = #tpu.dot_dimension_numbers<[1], [0], [0], [1], [0, 0, 1, 1], [], []>} : vector<16x80xbf16>, vector<80x128xbf16>, vector<16x128xf32> -> vector<16x128xf32>
    %137 = vector.broadcast %126 : vector<16x1xf32> to vector<16x128xf32>
    %138 = arith.addf %136, %137 : vector<16x128xf32>
    %cst_93 = arith.constant 0.000000e+00 : f32
    %139 = vector.broadcast %cst_93 : f32 to vector<16x128xf32>
    %140 = arith.maximumf %138, %139 : vector<16x128xf32>
    %c0_94 = arith.constant 0 : index
    %c0_95 = arith.constant 0 : index
    %141 = vector.load %arg26[%c0_94, %c0_95] : memref<32x16xbf16, #tpu.memory_space<vmem>>, vector<32x16xbf16>
    %c0_96 = arith.constant 0 : index
    %c0_97 = arith.constant 0 : index
    %142 = vector.load %arg27[%c0_96, %c0_97] : memref<32x1xf32, #tpu.memory_space<vmem>>, vector<32x1xf32>
    %143 = arith.truncf %140 : vector<16x128xf32> to vector<16x128xbf16>
    %cst_98 = arith.constant dense<0.000000e+00> : vector<32x128xf32>
    %144 = tpu.matmul %141, %143, %cst_98 {dimension_numbers = #tpu.dot_dimension_numbers<[1], [0], [0], [1], [0, 0, 1, 1], [], []>} : vector<32x16xbf16>, vector<16x128xbf16>, vector<32x128xf32> -> vector<32x128xf32>
    %145 = vector.broadcast %142 : vector<32x1xf32> to vector<32x128xf32>
    %146 = arith.addf %144, %145 : vector<32x128xf32>
    %cst_99 = arith.constant 0.000000e+00 : f32
    %147 = vector.broadcast %cst_99 : f32 to vector<32x128xf32>
    %148 = arith.maximumf %146, %147 : vector<32x128xf32>
    %149 = arith.addf %148, %116 : vector<32x128xf32>
    %c0_100 = arith.constant 0 : index
    %c0_101 = arith.constant 0 : index
    %c0_102 = arith.constant 0 : index
    %150 = vector.load %arg28[%c0_100, %c0_101, %c0_102] : memref<1x32x128xf32, #tpu.memory_space<vmem>>, vector<1x32x128xf32>
    %151 = vector.shape_cast %150 : vector<1x32x128xf32> to vector<32x128xf32>
    %152 = vector.shape_cast %149 : vector<32x128xf32> to vector<1x32x128xf32>
    tpu.vector_store %arg28[%c0_100, %c0_101, %c0_102], %152 {strides = array<i32>} : memref<1x32x128xf32, #tpu.memory_space<vmem>>, vector<1x32x128xf32>,
    return
  }
  func.func @transform_0(%arg0: i32) -> (i32, i32, i32) {
    %c0_i32 = arith.constant 0 : i32
    %c0_i32_0 = arith.constant 0 : i32
    %c0_i32_1 = arith.constant 0 : i32
    return %arg0, %c0_i32, %c0_i32_0 : i32, i32, i32
  }
  func.func @transform_1(%arg0: i32) -> (i32, i32) {
    %c0_i32 = arith.constant 0 : i32
    %c0_i32_0 = arith.constant 0 : i32
    %c0_i32_1 = arith.constant 0 : i32
    return %c0_i32, %c0_i32_0 : i32, i32
  }
  func.func @transform_2(%arg0: i32) -> (i32, i32) {
    %c0_i32 = arith.constant 0 : i32
    %c0_i32_0 = arith.constant 0 : i32
    %c0_i32_1 = arith.constant 0 : i32
    return %c0_i32, %c0_i32_0 : i32, i32
  }
  func.func @transform_3(%arg0: i32) -> (i32, i32) {
    %c0_i32 = arith.constant 0 : i32
    %c0_i32_0 = arith.constant 0 : i32
    %c0_i32_1 = arith.constant 0 : i32
    return %c0_i32, %c0_i32_0 : i32, i32
  }
  func.func @transform_4(%arg0: i32) -> (i32, i32) {
    %c0_i32 = arith.constant 0 : i32
    %c0_i32_0 = arith.constant 0 : i32
    %c0_i32_1 = arith.constant 0 : i32
    return %c0_i32, %c0_i32_0 : i32, i32
  }
  func.func @transform_5(%arg0: i32) -> (i32, i32) {
    %c0_i32 = arith.constant 0 : i32
    %c0_i32_0 = arith.constant 0 : i32
    %c0_i32_1 = arith.constant 0 : i32
    return %c0_i32, %c0_i32_0 : i32, i32
  }
  func.func @transform_6(%arg0: i32) -> (i32, i32) {
    %c0_i32 = arith.constant 0 : i32
    %c0_i32_0 = arith.constant 0 : i32
    %c0_i32_1 = arith.constant 0 : i32
    return %c0_i32, %c0_i32_0 : i32, i32
  }
  func.func @transform_7(%arg0: i32) -> (i32, i32) {
    %c0_i32 = arith.constant 0 : i32
    %c0_i32_0 = arith.constant 0 : i32
    %c0_i32_1 = arith.constant 0 : i32
    return %c0_i32, %c0_i32_0 : i32, i32
  }
  func.func @transform_8(%arg0: i32) -> (i32, i32) {
    %c0_i32 = arith.constant 0 : i32
    %c0_i32_0 = arith.constant 0 : i32
    %c0_i32_1 = arith.constant 0 : i32
    return %c0_i32, %c0_i32_0 : i32, i32
  }
  func.func @transform_9(%arg0: i32) -> (i32, i32) {
    %c0_i32 = arith.constant 0 : i32
    %c0_i32_0 = arith.constant 0 : i32
    %c0_i32_1 = arith.constant 0 : i32
    return %c0_i32, %c0_i32_0 : i32, i32
  }
  func.func @transform_10(%arg0: i32) -> (i32, i32) {
    %c0_i32 = arith.constant 0 : i32
    %c0_i32_0 = arith.constant 0 : i32
    %c0_i32_1 = arith.constant 0 : i32
    return %c0_i32, %c0_i32_0 : i32, i32
  }
  func.func @transform_11(%arg0: i32) -> (i32, i32) {
    %c0_i32 = arith.constant 0 : i32
    %c0_i32_0 = arith.constant 0 : i32
    %c0_i32_1 = arith.constant 0 : i32
    return %c0_i32, %c0_i32_0 : i32, i32
  }
  func.func @transform_12(%arg0: i32) -> (i32, i32) {
    %c0_i32 = arith.constant 0 : i32
    %c0_i32_0 = arith.constant 0 : i32
    %c0_i32_1 = arith.constant 0 : i32
    return %c0_i32, %c0_i32_0 : i32, i32
  }
  func.func @transform_13(%arg0: i32) -> (i32, i32) {
    %c0_i32 = arith.constant 0 : i32
    %c0_i32_0 = arith.constant 0 : i32
    %c0_i32_1 = arith.constant 0 : i32
    return %c0_i32, %c0_i32_0 : i32, i32
  }
  func.func @transform_14(%arg0: i32) -> (i32, i32) {
    %c0_i32 = arith.constant 0 : i32
    %c0_i32_0 = arith.constant 0 : i32
    %c0_i32_1 = arith.constant 0 : i32
    return %c0_i32, %c0_i32_0 : i32, i32
  }
  func.func @transform_15(%arg0: i32) -> (i32, i32) {
    %c0_i32 = arith.constant 0 : i32
    %c0_i32_0 = arith.constant 0 : i32
    %c0_i32_1 = arith.constant 0 : i32
    return %c0_i32, %c0_i32_0 : i32, i32
  }
  func.func @transform_16(%arg0: i32) -> (i32, i32) {
    %c0_i32 = arith.constant 0 : i32
    %c0_i32_0 = arith.constant 0 : i32
    %c0_i32_1 = arith.constant 0 : i32
    return %c0_i32, %c0_i32_0 : i32, i32
  }
  func.func @transform_17(%arg0: i32) -> (i32, i32) {
    %c0_i32 = arith.constant 0 : i32
    %c0_i32_0 = arith.constant 0 : i32
    %c0_i32_1 = arith.constant 0 : i32
    return %c0_i32, %c0_i32_0 : i32, i32
  }
  func.func @transform_18(%arg0: i32) -> (i32, i32) {
    %c0_i32 = arith.constant 0 : i32
    %c0_i32_0 = arith.constant 0 : i32
    %c0_i32_1 = arith.constant 0 : i32
    return %c0_i32, %c0_i32_0 : i32, i32
  }
  func.func @transform_19(%arg0: i32) -> (i32, i32) {
    %c0_i32 = arith.constant 0 : i32
    %c0_i32_0 = arith.constant 0 : i32
    %c0_i32_1 = arith.constant 0 : i32
    return %c0_i32, %c0_i32_0 : i32, i32
  }
  func.func @transform_20(%arg0: i32) -> (i32, i32) {
    %c0_i32 = arith.constant 0 : i32
    %c0_i32_0 = arith.constant 0 : i32
    %c0_i32_1 = arith.constant 0 : i32
    return %c0_i32, %c0_i32_0 : i32, i32
  }
  func.func @transform_21(%arg0: i32) -> (i32, i32) {
    %c0_i32 = arith.constant 0 : i32
    %c0_i32_0 = arith.constant 0 : i32
    %c0_i32_1 = arith.constant 0 : i32
    return %c0_i32, %c0_i32_0 : i32, i32
  }
  func.func @transform_22(%arg0: i32) -> (i32, i32) {
    %c0_i32 = arith.constant 0 : i32
    %c0_i32_0 = arith.constant 0 : i32
    %c0_i32_1 = arith.constant 0 : i32
    return %c0_i32, %c0_i32_0 : i32, i32
  }
  func.func @transform_23(%arg0: i32) -> (i32, i32) {
    %c0_i32 = arith.constant 0 : i32
    %c0_i32_0 = arith.constant 0 : i32
    %c0_i32_1 = arith.constant 0 : i32
    return %c0_i32, %c0_i32_0 : i32, i32
  }
  func.func @transform_24(%arg0: i32) -> (i32, i32) {
    %c0_i32 = arith.constant 0 : i32
    %c0_i32_0 = arith.constant 0 : i32
    %c0_i32_1 = arith.constant 0 : i32
    return %c0_i32, %c0_i32_0 : i32, i32
  }
  func.func @transform_25(%arg0: i32) -> (i32, i32) {
    %c0_i32 = arith.constant 0 : i32
    %c0_i32_0 = arith.constant 0 : i32
    %c0_i32_1 = arith.constant 0 : i32
    return %c0_i32, %c0_i32_0 : i32, i32
  }
  func.func @transform_26(%arg0: i32) -> (i32, i32) {
    %c0_i32 = arith.constant 0 : i32
    %c0_i32_0 = arith.constant 0 : i32
    %c0_i32_1 = arith.constant 0 : i32
    return %c0_i32, %c0_i32_0 : i32, i32
  }
  func.func @transform_27(%arg0: i32) -> (i32, i32, i32) {
    %c0_i32 = arith.constant 0 : i32
    %c0_i32_0 = arith.constant 0 : i32
    %c0_i32_1 = arith.constant 0 : i32
    return %arg0, %c0_i32, %c0_i32_0 : i32, i32, i32
  }
}

</mosaic_0001>

<llo_original>
// kernel: tpu_custom_call.1
$region0: #{tpu_custom_call.1}
  #allocation0 [shape = 'u32[]', space=smem, size = 0x4, offset = 0x4, fixed_abs, tag = 'smem constant byte address 0x4 - core index']
  #allocation1 [shape = 'u32[144,128]{1,0:T(1,128)}', space=vmem, size = 0x12000, scoped, tag = 'internal scratch']
  #allocation2 [shape = 'f32[16,384]{1,0:T(8,128)}', space=vmem, size = 0x6000, scoped, tag = 'scratch operand']
  %s0 = inlined_call_operand.vmem [shape: f32[2,16,128], index: 0, kind: input, shape index: {}]
  %s1 = inlined_call_operand.vmem [shape: bf16[32,80], index: 1, kind: input, shape index: {}]
  %s2 = inlined_call_operand.vmem [shape: f32[32,1], index: 2, kind: input, shape index: {}]
  %s3 = inlined_call_operand.vmem [shape: bf16[16,32], index: 3, kind: input, shape index: {}]
  %s4 = inlined_call_operand.vmem [shape: f32[16,1], index: 4, kind: input, shape index: {}]
  %s5 = inlined_call_operand.vmem [shape: bf16[16,80], index: 5, kind: input, shape index: {}]
  %s6 = inlined_call_operand.vmem [shape: f32[16,1], index: 6, kind: input, shape index: {}]
  %s7 = inlined_call_operand.vmem [shape: bf16[32,16], index: 7, kind: input, shape index: {}]
  %s8 = inlined_call_operand.vmem [shape: f32[32,1], index: 8, kind: input, shape index: {}]
  %s9 = inlined_call_operand.vmem [shape: bf16[8,32], index: 9, kind: input, shape index: {}]
  %s10 = inlined_call_operand.vmem [shape: f32[8,1], index: 10, kind: input, shape index: {}]
  %s11 = inlined_call_operand.vmem [shape: bf16[8,40], index: 11, kind: input, shape index: {}]
  %s12 = inlined_call_operand.vmem [shape: f32[8,1], index: 12, kind: input, shape index: {}]
  %s13 = inlined_call_operand.vmem [shape: bf16[32,8], index: 13, kind: input, shape index: {}]
  %s14 = inlined_call_operand.vmem [shape: f32[32,1], index: 14, kind: input, shape index: {}]
  %s15 = inlined_call_operand.vmem [shape: bf16[16,32], index: 15, kind: input, shape index: {}]
  %s16 = inlined_call_operand.vmem [shape: f32[16,1], index: 16, kind: input, shape index: {}]
  %s17 = inlined_call_operand.vmem [shape: bf16[16,80], index: 17, kind: input, shape index: {}]
  %s18 = inlined_call_operand.vmem [shape: f32[16,1], index: 18, kind: input, shape index: {}]
  %s19 = inlined_call_operand.vmem [shape: bf16[32,16], index: 19, kind: input, shape index: {}]
  %s20 = inlined_call_operand.vmem [shape: f32[32,1], index: 20, kind: input, shape index: {}]
  %s21 = inlined_call_operand.vmem [shape: bf16[16,32], index: 21, kind: input, shape index: {}]
  %s22 = inlined_call_operand.vmem [shape: f32[16,1], index: 22, kind: input, shape index: {}]
  %s23 = inlined_call_operand.vmem [shape: bf16[16,80], index: 23, kind: input, shape index: {}]
  %s24 = inlined_call_operand.vmem [shape: f32[16,1], index: 24, kind: input, shape index: {}]
  %s25 = inlined_call_operand.vmem [shape: bf16[32,16], index: 25, kind: input, shape index: {}]
  %s26 = inlined_call_operand.vmem [shape: f32[32,1], index: 26, kind: input, shape index: {}]
  %s27 = inlined_call_operand.hbm [shape: f32[2,32,128], index: 27, kind: output, shape index: {}]
  %s28 = sld [smem:[#allocation0]]
  $region141: #{tpu_custom_call.1} parent=0
    _
  %s30 = ssub.s32 1, %s28
  %s31 = scalar_select 0, %s30, %s28
  $region1: #{tpu_custom_call.1} parent=0
    #allocation3 [shape = 'u8[32768]{0}', space=vmem, size = 0x8000, scoped, tag = 'output window, operand 0']
    #allocation4 [shape = 's32[2]{0}', space=sflag, size = 0x8, scoped, tag = 'scoped memory for tpu_custom_call.1']
    %32 = vsyncpa [#allocation4], 0
    %s33 = scalar_lea.sflag [#allocation4], 1
    %34 = vsyncpa %s33, 0
    loop: start=0, step=1, limit=4
    $region2: #{tpu_custom_call.1} parent=1 // loop_pre_header
      _
    $region3: #{tpu_custom_call.1} parent=1 // loop_header
      %s36 = sphi 0, %s40
      %p37 = scmp.ge.s32.totalorder %s36, 4
      %s46 = sphi 0, %s48
      %s49 = sphi 0, %s46
      %s50 = sphi 0, %s49
      %s66 = sphi 0, %s50
      %s70 = sphi 0, %s70
      %s72 = sphi 0, %s70
      %s73 = sphi 0, %s72
      %s87 = sphi 0, %s73
      %s91 = sphi 0, %s91
      %s93 = sphi 0, %s91
      %s94 = sphi 0, %s93
      %s108 = sphi 0, %s94
      %s112 = sphi 0, %s112
      %s114 = sphi 0, %s112
      %s115 = sphi 0, %s114
      %s129 = sphi 0, %s115
      %s133 = sphi 0, %s133
      %s135 = sphi 0, %s133
      %s136 = sphi 0, %s135
      %s150 = sphi 0, %s136
      %s154 = sphi 0, %s154
      %s156 = sphi 0, %s154
      %s157 = sphi 0, %s156
      %s171 = sphi 0, %s157
      %s175 = sphi 0, %s175
      %s177 = sphi 0, %s175
      %s178 = sphi 0, %s177
      %s192 = sphi 0, %s178
      %s196 = sphi 0, %s196
      %s198 = sphi 0, %s196
      %s199 = sphi 0, %s198
      %s213 = sphi 0, %s199
      %s217 = sphi 0, %s217
      %s219 = sphi 0, %s217
      %s220 = sphi 0, %s219
      %s234 = sphi 0, %s220
      %s238 = sphi 0, %s238
      %s240 = sphi 0, %s238
      %s241 = sphi 0, %s240
      %s255 = sphi 0, %s241
      %s259 = sphi 0, %s259
      %s261 = sphi 0, %s259
      %s262 = sphi 0, %s261
      %s276 = sphi 0, %s262
      %s280 = sphi 0, %s280
      %s282 = sphi 0, %s280
      %s283 = sphi 0, %s282
      %s297 = sphi 0, %s283
      %s301 = sphi 0, %s301
      %s303 = sphi 0, %s301
      %s304 = sphi 0, %s303
      %s318 = sphi 0, %s304
      %s322 = sphi 0, %s322
      %s324 = sphi 0, %s322
      %s325 = sphi 0, %s324
      %s339 = sphi 0, %s325
      %s343 = sphi 0, %s343
      %s345 = sphi 0, %s343
      %s346 = sphi 0, %s345
      %s360 = sphi 0, %s346
      %s364 = sphi 0, %s364
      %s366 = sphi 0, %s364
      %s367 = sphi 0, %s366
      %s381 = sphi 0, %s367
      %s385 = sphi 0, %s385
      %s387 = sphi 0, %s385
      %s388 = sphi 0, %s387
      %s402 = sphi 0, %s388
      %s406 = sphi 0, %s406
      %s408 = sphi 0, %s406
      %s409 = sphi 0, %s408
      %s423 = sphi 0, %s409
      %s427 = sphi 0, %s427
      %s429 = sphi 0, %s427
      %s430 = sphi 0, %s429
      %s444 = sphi 0, %s430
      %s448 = sphi 0, %s448
      %s450 = sphi 0, %s448
      %s451 = sphi 0, %s450
      %s465 = sphi 0, %s451
      %s469 = sphi 0, %s469
      %s471 = sphi 0, %s469
      %s472 = sphi 0, %s471
      %s486 = sphi 0, %s472
      %s490 = sphi 0, %s490
      %s492 = sphi 0, %s490
      %s493 = sphi 0, %s492
      %s507 = sphi 0, %s493
      %s511 = sphi 0, %s511
      %s513 = sphi 0, %s511
      %s514 = sphi 0, %s513
      %s528 = sphi 0, %s514
      %s532 = sphi 0, %s532
      %s534 = sphi 0, %s532
      %s535 = sphi 0, %s534
      %s549 = sphi 0, %s535
      %s553 = sphi 0, %s553
      %s555 = sphi 0, %s553
      %s556 = sphi 0, %s555
      %s570 = sphi 0, %s556
      %s574 = sphi 0, %s574
      %s576 = sphi 0, %s574
      %s577 = sphi 0, %s576
      %s591 = sphi 0, %s577
      %s595 = sphi 0, %s595
      %s597 = sphi 0, %s595
      %s598 = sphi 0, %s597
      %s612 = sphi 0, %s598
      %s618 = sphi 0, %s620
      %s621 = sphi 0, %s618
      %s622 = sphi 0, %s621
      %s638 = sphi 0, %s622
    $region4: #{tpu_custom_call.1} parent=1 // loop_header_branch
      %39 = sbr.rel (%p37) target = $region8
    $region5: #{tpu_custom_call.1} parent=1 // loop_body
      %s41 = ssub.s32 %s36, 1
      %s42 = ssub.s32 %s36, 2
      %s43 = sadd.s32 %s36, 1
      %s44 = ssub.s32 %s36, %s43
      %p45 = scmp.eq.s32.totalorder %s44, 0
      %s47 = sadd.s32 %s46, 1
      %s48 = scalar_select %p45, %s46, %s47
      %p51 = pneg %p45
      %p52 = scmp.eq.s32.totalorder %s36, 1
      %p53 = por %p51, %p52
      %p54 = scmp.ne.s32.totalorder %s46, %s49
      %p55 = scmp.eq.s32.totalorder %s36, 0
      %p56 = por %p54, %p55
      %p57 = scmp.ne.s32.totalorder %s46, %s49
      %p58 = scmp.eq.s32.totalorder %s41, 1
      %p59 = por %p57, %p58
      %p60 = scmp.ne.s32.totalorder %s49, %s50
      %p61 = scmp.eq.s32.totalorder %s41, 0
      %p62 = por %p60, %p61
      %p63 = scmp.ne.s32.totalorder %s49, %s50
      %p64 = scmp.eq.s32.totalorder %s42, 1
      %p65 = por %p63, %p64
      %p67 = scmp.ne.s32.totalorder %s50, %s66
      %p68 = scmp.eq.s32.totalorder %s42, 0
      %p69 = por %p67, %p68
      %s71 = sadd.s32 %s70, 1
      %p74 = scmp.eq.s32.totalorder %s36, 1
      %p75 = scmp.ne.s32.totalorder %s70, %s72
      %p76 = scmp.eq.s32.totalorder %s36, 0
      %p77 = por %p75, %p76
      %p78 = scmp.ne.s32.totalorder %s70, %s72
      %p79 = scmp.eq.s32.totalorder %s41, 1
      %p80 = por %p78, %p79
      %p81 = scmp.ne.s32.totalorder %s72, %s73
      %p82 = scmp.eq.s32.totalorder %s41, 0
      %p83 = por %p81, %p82
      %p84 = scmp.ne.s32.totalorder %s72, %s73
      %p85 = scmp.eq.s32.totalorder %s42, 1
      %p86 = por %p84, %p85
      %p88 = scmp.ne.s32.totalorder %s73, %s87
      %p89 = scmp.eq.s32.totalorder %s42, 0
      %p90 = por %p88, %p89
      %s92 = sadd.s32 %s91, 1
      %p95 = scmp.eq.s32.totalorder %s36, 1
      %p96 = scmp.ne.s32.totalorder %s91, %s93
      %p97 = scmp.eq.s32.totalorder %s36, 0
      %p98 = por %p96, %p97
      %p99 = scmp.ne.s32.totalorder %s91, %s93
      %p100 = scmp.eq.s32.totalorder %s41, 1
      %p101 = por %p99, %p100
      %p102 = scmp.ne.s32.totalorder %s93, %s94
      %p103 = scmp.eq.s32.totalorder %s41, 0
      %p104 = por %p102, %p103
      %p105 = scmp.ne.s32.totalorder %s93, %s94
      %p106 = scmp.eq.s32.totalorder %s42, 1
      %p107 = por %p105, %p106
      %p109 = scmp.ne.s32.totalorder %s94, %s108
      %p110 = scmp.eq.s32.totalorder %s42, 0
      %p111 = por %p109, %p110
      %s113 = sadd.s32 %s112, 1
      %p116 = scmp.eq.s32.totalorder %s36, 1
      %p117 = scmp.ne.s32.totalorder %s112, %s114
      %p118 = scmp.eq.s32.totalorder %s36, 0
      %p119 = por %p117, %p118
      %p120 = scmp.ne.s32.totalorder %s112, %s114
      %p121 = scmp.eq.s32.totalorder %s41, 1
      %p122 = por %p120, %p121
      %p123 = scmp.ne.s32.totalorder %s114, %s115
      %p124 = scmp.eq.s32.totalorder %s41, 0
      %p125 = por %p123, %p124
      %p126 = scmp.ne.s32.totalorder %s114, %s115
      %p127 = scmp.eq.s32.totalorder %s42, 1
      %p128 = por %p126, %p127
      %p130 = scmp.ne.s32.totalorder %s115, %s129
      %p131 = scmp.eq.s32.totalorder %s42, 0
      %p132 = por %p130, %p131
      %s134 = sadd.s32 %s133, 1
      %p137 = scmp.eq.s32.totalorder %s36, 1
      %p138 = scmp.ne.s32.totalorder %s133, %s135
      %p139 = scmp.eq.s32.totalorder %s36, 0
      %p140 = por %p138, %p139
      %p141 = scmp.ne.s32.totalorder %s133, %s135
      %p142 = scmp.eq.s32.totalorder %s41, 1
      %p143 = por %p141, %p142
      %p144 = scmp.ne.s32.totalorder %s135, %s136
      %p145 = scmp.eq.s32.totalorder %s41, 0
      %p146 = por %p144, %p145
      %p147 = scmp.ne.s32.totalorder %s135, %s136
      %p148 = scmp.eq.s32.totalorder %s42, 1
      %p149 = por %p147, %p148
      %p151 = scmp.ne.s32.totalorder %s136, %s150
      %p152 = scmp.eq.s32.totalorder %s42, 0
      %p153 = por %p151, %p152
      %s155 = sadd.s32 %s154, 1
      %p158 = scmp.eq.s32.totalorder %s36, 1
      %p159 = scmp.ne.s32.totalorder %s154, %s156
      %p160 = scmp.eq.s32.totalorder %s36, 0
      %p161 = por %p159, %p160
      %p162 = scmp.ne.s32.totalorder %s154, %s156
      %p163 = scmp.eq.s32.totalorder %s41, 1
      %p164 = por %p162, %p163
      %p165 = scmp.ne.s32.totalorder %s156, %s157
      %p166 = scmp.eq.s32.totalorder %s41, 0
      %p167 = por %p165, %p166
      %p168 = scmp.ne.s32.totalorder %s156, %s157
      %p169 = scmp.eq.s32.totalorder %s42, 1
      %p170 = por %p168, %p169
      %p172 = scmp.ne.s32.totalorder %s157, %s171
      %p173 = scmp.eq.s32.totalorder %s42, 0
      %p174 = por %p172, %p173
      %s176 = sadd.s32 %s175, 1
      %p179 = scmp.eq.s32.totalorder %s36, 1
      %p180 = scmp.ne.s32.totalorder %s175, %s177
      %p181 = scmp.eq.s32.totalorder %s36, 0
      %p182 = por %p180, %p181
      %p183 = scmp.ne.s32.totalorder %s175, %s177
      %p184 = scmp.eq.s32.totalorder %s41, 1
      %p185 = por %p183, %p184
      %p186 = scmp.ne.s32.totalorder %s177, %s178
      %p187 = scmp.eq.s32.totalorder %s41, 0
      %p188 = por %p186, %p187
      %p189 = scmp.ne.s32.totalorder %s177, %s178
      %p190 = scmp.eq.s32.totalorder %s42, 1
      %p191 = por %p189, %p190
      %p193 = scmp.ne.s32.totalorder %s178, %s192
      %p194 = scmp.eq.s32.totalorder %s42, 0
      %p195 = por %p193, %p194
      %s197 = sadd.s32 %s196, 1
      %p200 = scmp.eq.s32.totalorder %s36, 1
      %p201 = scmp.ne.s32.totalorder %s196, %s198
      %p202 = scmp.eq.s32.totalorder %s36, 0
      %p203 = por %p201, %p202
      %p204 = scmp.ne.s32.totalorder %s196, %s198
      %p205 = scmp.eq.s32.totalorder %s41, 1
      %p206 = por %p204, %p205
      %p207 = scmp.ne.s32.totalorder %s198, %s199
      %p208 = scmp.eq.s32.totalorder %s41, 0
      %p209 = por %p207, %p208
      %p210 = scmp.ne.s32.totalorder %s198, %s199
      %p211 = scmp.eq.s32.totalorder %s42, 1
      %p212 = por %p210, %p211
      %p214 = scmp.ne.s32.totalorder %s199, %s213
      %p215 = scmp.eq.s32.totalorder %s42, 0
      %p216 = por %p214, %p215
      %s218 = sadd.s32 %s217, 1
      %p221 = scmp.eq.s32.totalorder %s36, 1
      %p222 = scmp.ne.s32.totalorder %s217, %s219
      %p223 = scmp.eq.s32.totalorder %s36, 0
      %p224 = por %p222, %p223
      %p225 = scmp.ne.s32.totalorder %s217, %s219
      %p226 = scmp.eq.s32.totalorder %s41, 1
      %p227 = por %p225, %p226
      %p228 = scmp.ne.s32.totalorder %s219, %s220
      %p229 = scmp.eq.s32.totalorder %s41, 0
      %p230 = por %p228, %p229
      %p231 = scmp.ne.s32.totalorder %s219, %s220
      %p232 = scmp.eq.s32.totalorder %s42, 1
      %p233 = por %p231, %p232
      %p235 = scmp.ne.s32.totalorder %s220, %s234
      %p236 = scmp.eq.s32.totalorder %s42, 0
      %p237 = por %p235, %p236
      %s239 = sadd.s32 %s238, 1
      %p242 = scmp.eq.s32.totalorder %s36, 1
      %p243 = scmp.ne.s32.totalorder %s238, %s240
      %p244 = scmp.eq.s32.totalorder %s36, 0
      %p245 = por %p243, %p244
      %p246 = scmp.ne.s32.totalorder %s238, %s240
      %p247 = scmp.eq.s32.totalorder %s41, 1
      %p248 = por %p246, %p247
      %p249 = scmp.ne.s32.totalorder %s240, %s241
      %p250 = scmp.eq.s32.totalorder %s41, 0
      %p251 = por %p249, %p250
      %p252 = scmp.ne.s32.totalorder %s240, %s241
      %p253 = scmp.eq.s32.totalorder %s42, 1
      %p254 = por %p252, %p253
      %p256 = scmp.ne.s32.totalorder %s241, %s255
      %p257 = scmp.eq.s32.totalorder %s42, 0
      %p258 = por %p256, %p257
      %s260 = sadd.s32 %s259, 1
      %p263 = scmp.eq.s32.totalorder %s36, 1
      %p264 = scmp.ne.s32.totalorder %s259, %s261
      %p265 = scmp.eq.s32.totalorder %s36, 0
      %p266 = por %p264, %p265
      %p267 = scmp.ne.s32.totalorder %s259, %s261
      %p268 = scmp.eq.s32.totalorder %s41, 1
      %p269 = por %p267, %p268
      %p270 = scmp.ne.s32.totalorder %s261, %s262
      %p271 = scmp.eq.s32.totalorder %s41, 0
      %p272 = por %p270, %p271
      %p273 = scmp.ne.s32.totalorder %s261, %s262
      %p274 = scmp.eq.s32.totalorder %s42, 1
      %p275 = por %p273, %p274
      %p277 = scmp.ne.s32.totalorder %s262, %s276
      %p278 = scmp.eq.s32.totalorder %s42, 0
      %p279 = por %p277, %p278
      %s281 = sadd.s32 %s280, 1
      %p284 = scmp.eq.s32.totalorder %s36, 1
      %p285 = scmp.ne.s32.totalorder %s280, %s282
      %p286 = scmp.eq.s32.totalorder %s36, 0
      %p287 = por %p285, %p286
      %p288 = scmp.ne.s32.totalorder %s280, %s282
      %p289 = scmp.eq.s32.totalorder %s41, 1
      %p290 = por %p288, %p289
      %p291 = scmp.ne.s32.totalorder %s282, %s283
      %p292 = scmp.eq.s32.totalorder %s41, 0
      %p293 = por %p291, %p292
      %p294 = scmp.ne.s32.totalorder %s282, %s283
      %p295 = scmp.eq.s32.totalorder %s42, 1
      %p296 = por %p294, %p295
      %p298 = scmp.ne.s32.totalorder %s283, %s297
      %p299 = scmp.eq.s32.totalorder %s42, 0
      %p300 = por %p298, %p299
      %s302 = sadd.s32 %s301, 1
      %p305 = scmp.eq.s32.totalorder %s36, 1
      %p306 = scmp.ne.s32.totalorder %s301, %s303
      %p307 = scmp.eq.s32.totalorder %s36, 0
      %p308 = por %p306, %p307
      %p309 = scmp.ne.s32.totalorder %s301, %s303
      %p310 = scmp.eq.s32.totalorder %s41, 1
      %p311 = por %p309, %p310
      %p312 = scmp.ne.s32.totalorder %s303, %s304
      %p313 = scmp.eq.s32.totalorder %s41, 0
      %p314 = por %p312, %p313
      %p315 = scmp.ne.s32.totalorder %s303, %s304
      %p316 = scmp.eq.s32.totalorder %s42, 1
      %p317 = por %p315, %p316
      %p319 = scmp.ne.s32.totalorder %s304, %s318
      %p320 = scmp.eq.s32.totalorder %s42, 0
      %p321 = por %p319, %p320
      %s323 = sadd.s32 %s322, 1
      %p326 = scmp.eq.s32.totalorder %s36, 1
      %p327 = scmp.ne.s32.totalorder %s322, %s324
      %p328 = scmp.eq.s32.totalorder %s36, 0
      %p329 = por %p327, %p328
      %p330 = scmp.ne.s32.totalorder %s322, %s324
      %p331 = scmp.eq.s32.totalorder %s41, 1
      %p332 = por %p330, %p331
      %p333 = scmp.ne.s32.totalorder %s324, %s325
      %p334 = scmp.eq.s32.totalorder %s41, 0
      %p335 = por %p333, %p334
      %p336 = scmp.ne.s32.totalorder %s324, %s325
      %p337 = scmp.eq.s32.totalorder %s42, 1
      %p338 = por %p336, %p337
      %p340 = scmp.ne.s32.totalorder %s325, %s339
      %p341 = scmp.eq.s32.totalorder %s42, 0
      %p342 = por %p340, %p341
      %s344 = sadd.s32 %s343, 1
      %p347 = scmp.eq.s32.totalorder %s36, 1
      %p348 = scmp.ne.s32.totalorder %s343, %s345
      %p349 = scmp.eq.s32.totalorder %s36, 0
      %p350 = por %p348, %p349
      %p351 = scmp.ne.s32.totalorder %s343, %s345
      %p352 = scmp.eq.s32.totalorder %s41, 1
      %p353 = por %p351, %p352
      %p354 = scmp.ne.s32.totalorder %s345, %s346
      %p355 = scmp.eq.s32.totalorder %s41, 0
      %p356 = por %p354, %p355
      %p357 = scmp.ne.s32.totalorder %s345, %s346
      %p358 = scmp.eq.s32.totalorder %s42, 1
      %p359 = por %p357, %p358
      %p361 = scmp.ne.s32.totalorder %s346, %s360
      %p362 = scmp.eq.s32.totalorder %s42, 0
      %p363 = por %p361, %p362
      %s365 = sadd.s32 %s364, 1
      %p368 = scmp.eq.s32.totalorder %s36, 1
      %p369 = scmp.ne.s32.totalorder %s364, %s366
      %p370 = scmp.eq.s32.totalorder %s36, 0
      %p371 = por %p369, %p370
      %p372 = scmp.ne.s32.totalorder %s364, %s366
      %p373 = scmp.eq.s32.totalorder %s41, 1
      %p374 = por %p372, %p373
      %p375 = scmp.ne.s32.totalorder %s366, %s367
      %p376 = scmp.eq.s32.totalorder %s41, 0
      %p377 = por %p375, %p376
      %p378 = scmp.ne.s32.totalorder %s366, %s367
      %p379 = scmp.eq.s32.totalorder %s42, 1
      %p380 = por %p378, %p379
      %p382 = scmp.ne.s32.totalorder %s367, %s381
      %p383 = scmp.eq.s32.totalorder %s42, 0
      %p384 = por %p382, %p383
      %s386 = sadd.s32 %s385, 1
      %p389 = scmp.eq.s32.totalorder %s36, 1
      %p390 = scmp.ne.s32.totalorder %s385, %s387
      %p391 = scmp.eq.s32.totalorder %s36, 0
      %p392 = por %p390, %p391
      %p393 = scmp.ne.s32.totalorder %s385, %s387
      %p394 = scmp.eq.s32.totalorder %s41, 1
      %p395 = por %p393, %p394
      %p396 = scmp.ne.s32.totalorder %s387, %s388
      %p397 = scmp.eq.s32.totalorder %s41, 0
      %p398 = por %p396, %p397
      %p399 = scmp.ne.s32.totalorder %s387, %s388
      %p400 = scmp.eq.s32.totalorder %s42, 1
      %p401 = por %p399, %p400
      %p403 = scmp.ne.s32.totalorder %s388, %s402
      %p404 = scmp.eq.s32.totalorder %s42, 0
      %p405 = por %p403, %p404
      %s407 = sadd.s32 %s406, 1
      %p410 = scmp.eq.s32.totalorder %s36, 1
      %p411 = scmp.ne.s32.totalorder %s406, %s408
      %p412 = scmp.eq.s32.totalorder %s36, 0
      %p413 = por %p411, %p412
      %p414 = scmp.ne.s32.totalorder %s406, %s408
      %p415 = scmp.eq.s32.totalorder %s41, 1
      %p416 = por %p414, %p415
      %p417 = scmp.ne.s32.totalorder %s408, %s409
      %p418 = scmp.eq.s32.totalorder %s41, 0
      %p419 = por %p417, %p418
      %p420 = scmp.ne.s32.totalorder %s408, %s409
      %p421 = scmp.eq.s32.totalorder %s42, 1
      %p422 = por %p420, %p421
      %p424 = scmp.ne.s32.totalorder %s409, %s423
      %p425 = scmp.eq.s32.totalorder %s42, 0
      %p426 = por %p424, %p425
      %s428 = sadd.s32 %s427, 1
      %p431 = scmp.eq.s32.totalorder %s36, 1
      %p432 = scmp.ne.s32.totalorder %s427, %s429
      %p433 = scmp.eq.s32.totalorder %s36, 0
      %p434 = por %p432, %p433
      %p435 = scmp.ne.s32.totalorder %s427, %s429
      %p436 = scmp.eq.s32.totalorder %s41, 1
      %p437 = por %p435, %p436
      %p438 = scmp.ne.s32.totalorder %s429, %s430
      %p439 = scmp.eq.s32.totalorder %s41, 0
      %p440 = por %p438, %p439
      %p441 = scmp.ne.s32.totalorder %s429, %s430
      %p442 = scmp.eq.s32.totalorder %s42, 1
      %p443 = por %p441, %p442
      %p445 = scmp.ne.s32.totalorder %s430, %s444
      %p446 = scmp.eq.s32.totalorder %s42, 0
      %p447 = por %p445, %p446
      %s449 = sadd.s32 %s448, 1
      %p452 = scmp.eq.s32.totalorder %s36, 1
      %p453 = scmp.ne.s32.totalorder %s448, %s450
      %p454 = scmp.eq.s32.totalorder %s36, 0
      %p455 = por %p453, %p454
      %p456 = scmp.ne.s32.totalorder %s448, %s450
      %p457 = scmp.eq.s32.totalorder %s41, 1
      %p458 = por %p456, %p457
      %p459 = scmp.ne.s32.totalorder %s450, %s451
      %p460 = scmp.eq.s32.totalorder %s41, 0
      %p461 = por %p459, %p460
      %p462 = scmp.ne.s32.totalorder %s450, %s451
      %p463 = scmp.eq.s32.totalorder %s42, 1
      %p464 = por %p462, %p463
      %p466 = scmp.ne.s32.totalorder %s451, %s465
      %p467 = scmp.eq.s32.totalorder %s42, 0
      %p468 = por %p466, %p467
      %s470 = sadd.s32 %s469, 1
      %p473 = scmp.eq.s32.totalorder %s36, 1
      %p474 = scmp.ne.s32.totalorder %s469, %s471
      %p475 = scmp.eq.s32.totalorder %s36, 0
      %p476 = por %p474, %p475
      %p477 = scmp.ne.s32.totalorder %s469, %s471
      %p478 = scmp.eq.s32.totalorder %s41, 1
      %p479 = por %p477, %p478
      %p480 = scmp.ne.s32.totalorder %s471, %s472
      %p481 = scmp.eq.s32.totalorder %s41, 0
      %p482 = por %p480, %p481
      %p483 = scmp.ne.s32.totalorder %s471, %s472
      %p484 = scmp.eq.s32.totalorder %s42, 1
      %p485 = por %p483, %p484
      %p487 = scmp.ne.s32.totalorder %s472, %s486
      %p488 = scmp.eq.s32.totalorder %s42, 0
      %p489 = por %p487, %p488
      %s491 = sadd.s32 %s490, 1
      %p494 = scmp.eq.s32.totalorder %s36, 1
      %p495 = scmp.ne.s32.totalorder %s490, %s492
      %p496 = scmp.eq.s32.totalorder %s36, 0
      %p497 = por %p495, %p496
      %p498 = scmp.ne.s32.totalorder %s490, %s492
      %p499 = scmp.eq.s32.totalorder %s41, 1
      %p500 = por %p498, %p499
      %p501 = scmp.ne.s32.totalorder %s492, %s493
      %p502 = scmp.eq.s32.totalorder %s41, 0
      %p503 = por %p501, %p502
      %p504 = scmp.ne.s32.totalorder %s492, %s493
      %p505 = scmp.eq.s32.totalorder %s42, 1
      %p506 = por %p504, %p505
      %p508 = scmp.ne.s32.totalorder %s493, %s507
      %p509 = scmp.eq.s32.totalorder %s42, 0
      %p510 = por %p508, %p509
      %s512 = sadd.s32 %s511, 1
      %p515 = scmp.eq.s32.totalorder %s36, 1
      %p516 = scmp.ne.s32.totalorder %s511, %s513
      %p517 = scmp.eq.s32.totalorder %s36, 0
      %p518 = por %p516, %p517
      %p519 = scmp.ne.s32.totalorder %s511, %s513
      %p520 = scmp.eq.s32.totalorder %s41, 1
      %p521 = por %p519, %p520
      %p522 = scmp.ne.s32.totalorder %s513, %s514
      %p523 = scmp.eq.s32.totalorder %s41, 0
      %p524 = por %p522, %p523
      %p525 = scmp.ne.s32.totalorder %s513, %s514
      %p526 = scmp.eq.s32.totalorder %s42, 1
      %p527 = por %p525, %p526
      %p529 = scmp.ne.s32.totalorder %s514, %s528
      %p530 = scmp.eq.s32.totalorder %s42, 0
      %p531 = por %p529, %p530
      %s533 = sadd.s32 %s532, 1
      %p536 = scmp.eq.s32.totalorder %s36, 1
      %p537 = scmp.ne.s32.totalorder %s532, %s534
      %p538 = scmp.eq.s32.totalorder %s36, 0
      %p539 = por %p537, %p538
      %p540 = scmp.ne.s32.totalorder %s532, %s534
      %p541 = scmp.eq.s32.totalorder %s41, 1
      %p542 = por %p540, %p541
      %p543 = scmp.ne.s32.totalorder %s534, %s535
      %p544 = scmp.eq.s32.totalorder %s41, 0
      %p545 = por %p543, %p544
      %p546 = scmp.ne.s32.totalorder %s534, %s535
      %p547 = scmp.eq.s32.totalorder %s42, 1
      %p548 = por %p546, %p547
      %p550 = scmp.ne.s32.totalorder %s535, %s549
      %p551 = scmp.eq.s32.totalorder %s42, 0
      %p552 = por %p550, %p551
      %s554 = sadd.s32 %s553, 1
      %p557 = scmp.eq.s32.totalorder %s36, 1
      %p558 = scmp.ne.s32.totalorder %s553, %s555
      %p559 = scmp.eq.s32.totalorder %s36, 0
      %p560 = por %p558, %p559
      %p561 = scmp.ne.s32.totalorder %s553, %s555
      %p562 = scmp.eq.s32.totalorder %s41, 1
      %p563 = por %p561, %p562
      %p564 = scmp.ne.s32.totalorder %s555, %s556
      %p565 = scmp.eq.s32.totalorder %s41, 0
      %p566 = por %p564, %p565
      %p567 = scmp.ne.s32.totalorder %s555, %s556
      %p568 = scmp.eq.s32.totalorder %s42, 1
      %p569 = por %p567, %p568
      %p571 = scmp.ne.s32.totalorder %s556, %s570
      %p572 = scmp.eq.s32.totalorder %s42, 0
      %p573 = por %p571, %p572
      %s575 = sadd.s32 %s574, 1
      %p578 = scmp.eq.s32.totalorder %s36, 1
      %p579 = scmp.ne.s32.totalorder %s574, %s576
      %p580 = scmp.eq.s32.totalorder %s36, 0
      %p581 = por %p579, %p580
      %p582 = scmp.ne.s32.totalorder %s574, %s576
      %p583 = scmp.eq.s32.totalorder %s41, 1
      %p584 = por %p582, %p583
      %p585 = scmp.ne.s32.totalorder %s576, %s577
      %p586 = scmp.eq.s32.totalorder %s41, 0
      %p587 = por %p585, %p586
      %p588 = scmp.ne.s32.totalorder %s576, %s577
      %p589 = scmp.eq.s32.totalorder %s42, 1
      %p590 = por %p588, %p589
      %p592 = scmp.ne.s32.totalorder %s577, %s591
      %p593 = scmp.eq.s32.totalorder %s42, 0
      %p594 = por %p592, %p593
      %s596 = sadd.s32 %s595, 1
      %p599 = scmp.eq.s32.totalorder %s36, 1
      %p600 = scmp.ne.s32.totalorder %s595, %s597
      %p601 = scmp.eq.s32.totalorder %s36, 0
      %p602 = por %p600, %p601
      %p603 = scmp.ne.s32.totalorder %s595, %s597
      %p604 = scmp.eq.s32.totalorder %s41, 1
      %p605 = por %p603, %p604
      %p606 = scmp.ne.s32.totalorder %s597, %s598
      %p607 = scmp.eq.s32.totalorder %s41, 0
      %p608 = por %p606, %p607
      %p609 = scmp.ne.s32.totalorder %s597, %s598
      %p610 = scmp.eq.s32.totalorder %s42, 1
      %p611 = por %p609, %p610
      %p613 = scmp.ne.s32.totalorder %s598, %s612
      %p614 = scmp.eq.s32.totalorder %s42, 0
      %p615 = por %p613, %p614
      %s616 = ssub.s32 %s36, %s43
      %p617 = scmp.eq.s32.totalorder %s616, 0
      %s619 = sadd.s32 %s618, 1
      %s620 = scalar_select %p617, %s618, %s619
      %p623 = pneg %p617
      %p624 = scmp.eq.s32.totalorder %s36, 1
      %p625 = por %p623, %p624
      %p626 = scmp.ne.s32.totalorder %s618, %s621
      %p627 = scmp.eq.s32.totalorder %s36, 0
      %p628 = por %p626, %p627
      %p629 = scmp.ne.s32.totalorder %s618, %s621
      %p630 = scmp.eq.s32.totalorder %s41, 1
      %p631 = por %p629, %p630
      %p632 = scmp.ne.s32.totalorder %s621, %s622
      %p633 = scmp.eq.s32.totalorder %s41, 0
      %p634 = por %p632, %p633
      %p635 = scmp.ne.s32.totalorder %s621, %s622
      %p636 = scmp.eq.s32.totalorder %s42, 1
      %p637 = por %p635, %p636
      %p639 = scmp.ne.s32.totalorder %s622, %s638
      %p640 = scmp.eq.s32.totalorder %s42, 0
      %p641 = por %p639, %p640
      %p642 = scmp.le.s32.totalorder 1, %s36
      %p643 = scmp.lt.s32.totalorder %s36, 3
      %p644 = pnand %p642, %p643
      %p645 = pneg %p644
      // Predicated region
      $region9: #{tpu_custom_call.1} parent=5 // pred_check
        _
      $region10: #{tpu_custom_call.1} parent=5 // pred_check_branch
        %647 = sbr.rel (%p644) target = $region12
      $region11: #{tpu_custom_call.1} parent=5 // pred_region
        %s648 = ssub.s32 %s36, 1
        // Predicated region
        $region13: #{tpu_custom_call.1} parent=11 // pred_check
          %p649 = pneg %p83
        $region14: #{tpu_custom_call.1} parent=11 // pred_check_branch
          %651 = sbr.rel (%p649) target = $region16
        $region15: #{tpu_custom_call.1} parent=11 // pred_region
          _
        $region16: #{tpu_custom_call.1} parent=11 // pred_fallthru
          _
        // Predicated region
        $region17: #{tpu_custom_call.1} parent=11 // pred_check
          %p652 = pneg %p104
        $region18: #{tpu_custom_call.1} parent=11 // pred_check_branch
          %654 = sbr.rel (%p652) target = $region20
        $region19: #{tpu_custom_call.1} parent=11 // pred_region
          _
        $region20: #{tpu_custom_call.1} parent=11 // pred_fallthru
          _
        // Predicated region
        $region21: #{tpu_custom_call.1} parent=11 // pred_check
          %p655 = pneg %p125
        $region22: #{tpu_custom_call.1} parent=11 // pred_check_branch
          %657 = sbr.rel (%p655) target = $region24
        $region23: #{tpu_custom_call.1} parent=11 // pred_region
          _
        $region24: #{tpu_custom_call.1} parent=11 // pred_fallthru
          _
        // Predicated region
        $region25: #{tpu_custom_call.1} parent=11 // pred_check
          %p658 = pneg %p146
        $region26: #{tpu_custom_call.1} parent=11 // pred_check_branch
          %660 = sbr.rel (%p658) target = $region28
        $region27: #{tpu_custom_call.1} parent=11 // pred_region
          _
        $region28: #{tpu_custom_call.1} parent=11 // pred_fallthru
          _
        // Predicated region
        $region29: #{tpu_custom_call.1} parent=11 // pred_check
          %p661 = pneg %p167
        $region30: #{tpu_custom_call.1} parent=11 // pred_check_branch
          %663 = sbr.rel (%p661) target = $region32
        $region31: #{tpu_custom_call.1} parent=11 // pred_region
          _
        $region32: #{tpu_custom_call.1} parent=11 // pred_fallthru
          _
        // Predicated region
        $region33: #{tpu_custom_call.1} parent=11 // pred_check
          %p664 = pneg %p188
        $region34: #{tpu_custom_call.1} parent=11 // pred_check_branch
          %666 = sbr.rel (%p664) target = $region36
        $region35: #{tpu_custom_call.1} parent=11 // pred_region
          _
        $region36: #{tpu_custom_call.1} parent=11 // pred_fallthru
          _
        // Predicated region
        $region37: #{tpu_custom_call.1} parent=11 // pred_check
          %p667 = pneg %p209
        $region38: #{tpu_custom_call.1} parent=11 // pred_check_branch
          %669 = sbr.rel (%p667) target = $region40
        $region39: #{tpu_custom_call.1} parent=11 // pred_region
          _
        $region40: #{tpu_custom_call.1} parent=11 // pred_fallthru
          _
        // Predicated region
        $region41: #{tpu_custom_call.1} parent=11 // pred_check
          %p670 = pneg %p230
        $region42: #{tpu_custom_call.1} parent=11 // pred_check_branch
          %672 = sbr.rel (%p670) target = $region44
        $region43: #{tpu_custom_call.1} parent=11 // pred_region
          _
        $region44: #{tpu_custom_call.1} parent=11 // pred_fallthru
          _
        // Predicated region
        $region45: #{tpu_custom_call.1} parent=11 // pred_check
          %p673 = pneg %p251
        $region46: #{tpu_custom_call.1} parent=11 // pred_check_branch
          %675 = sbr.rel (%p673) target = $region48
        $region47: #{tpu_custom_call.1} parent=11 // pred_region
          _
        $region48: #{tpu_custom_call.1} parent=11 // pred_fallthru
          _
        // Predicated region
        $region49: #{tpu_custom_call.1} parent=11 // pred_check
          %p676 = pneg %p272
        $region50: #{tpu_custom_call.1} parent=11 // pred_check_branch
          %678 = sbr.rel (%p676) target = $region52
        $region51: #{tpu_custom_call.1} parent=11 // pred_region
          _
        $region52: #{tpu_custom_call.1} parent=11 // pred_fallthru
          _
        // Predicated region
        $region53: #{tpu_custom_call.1} parent=11 // pred_check
          %p679 = pneg %p293
        $region54: #{tpu_custom_call.1} parent=11 // pred_check_branch
          %681 = sbr.rel (%p679) target = $region56
        $region55: #{tpu_custom_call.1} parent=11 // pred_region
          _
        $region56: #{tpu_custom_call.1} parent=11 // pred_fallthru
          _
        // Predicated region
        $region57: #{tpu_custom_call.1} parent=11 // pred_check
          %p682 = pneg %p314
        $region58: #{tpu_custom_call.1} parent=11 // pred_check_branch
          %684 = sbr.rel (%p682) target = $region60
        $region59: #{tpu_custom_call.1} parent=11 // pred_region
          _
        $region60: #{tpu_custom_call.1} parent=11 // pred_fallthru
          _
        // Predicated region
        $region61: #{tpu_custom_call.1} parent=11 // pred_check
          %p685 = pneg %p335
        $region62: #{tpu_custom_call.1} parent=11 // pred_check_branch
          %687 = sbr.rel (%p685) target = $region64
        $region63: #{tpu_custom_call.1} parent=11 // pred_region
          _
        $region64: #{tpu_custom_call.1} parent=11 // pred_fallthru
          _
        // Predicated region
        $region65: #{tpu_custom_call.1} parent=11 // pred_check
          %p688 = pneg %p356
        $region66: #{tpu_custom_call.1} parent=11 // pred_check_branch
          %690 = sbr.rel (%p688) target = $region68
        $region67: #{tpu_custom_call.1} parent=11 // pred_region
          _
        $region68: #{tpu_custom_call.1} parent=11 // pred_fallthru
          _
        // Predicated region
        $region69: #{tpu_custom_call.1} parent=11 // pred_check
          %p691 = pneg %p377
        $region70: #{tpu_custom_call.1} parent=11 // pred_check_branch
          %693 = sbr.rel (%p691) target = $region72
        $region71: #{tpu_custom_call.1} parent=11 // pred_region
          _
        $region72: #{tpu_custom_call.1} parent=11 // pred_fallthru
          _
        // Predicated region
        $region73: #{tpu_custom_call.1} parent=11 // pred_check
          %p694 = pneg %p398
        $region74: #{tpu_custom_call.1} parent=11 // pred_check_branch
          %696 = sbr.rel (%p694) target = $region76
        $region75: #{tpu_custom_call.1} parent=11 // pred_region
          _
        $region76: #{tpu_custom_call.1} parent=11 // pred_fallthru
          _
        // Predicated region
        $region77: #{tpu_custom_call.1} parent=11 // pred_check
          %p697 = pneg %p419
        $region78: #{tpu_custom_call.1} parent=11 // pred_check_branch
          %699 = sbr.rel (%p697) target = $region80
        $region79: #{tpu_custom_call.1} parent=11 // pred_region
          _
        $region80: #{tpu_custom_call.1} parent=11 // pred_fallthru
          _
        // Predicated region
        $region81: #{tpu_custom_call.1} parent=11 // pred_check
          %p700 = pneg %p440
        $region82: #{tpu_custom_call.1} parent=11 // pred_check_branch
          %702 = sbr.rel (%p700) target = $region84
        $region83: #{tpu_custom_call.1} parent=11 // pred_region
          _
        $region84: #{tpu_custom_call.1} parent=11 // pred_fallthru
          _
        // Predicated region
        $region85: #{tpu_custom_call.1} parent=11 // pred_check
          %p703 = pneg %p461
        $region86: #{tpu_custom_call.1} parent=11 // pred_check_branch
          %705 = sbr.rel (%p703) target = $region88
        $region87: #{tpu_custom_call.1} parent=11 // pred_region
          _
        $region88: #{tpu_custom_call.1} parent=11 // pred_fallthru
          _
        // Predicated region
        $region89: #{tpu_custom_call.1} parent=11 // pred_check
          %p706 = pneg %p482
        $region90: #{tpu_custom_call.1} parent=11 // pred_check_branch
          %708 = sbr.rel (%p706) target = $region92
        $region91: #{tpu_custom_call.1} parent=11 // pred_region
          _
        $region92: #{tpu_custom_call.1} parent=11 // pred_fallthru
          _
        // Predicated region
        $region93: #{tpu_custom_call.1} parent=11 // pred_check
          %p709 = pneg %p503
        $region94: #{tpu_custom_call.1} parent=11 // pred_check_branch
          %711 = sbr.rel (%p709) target = $region96
        $region95: #{tpu_custom_call.1} parent=11 // pred_region
          _
        $region96: #{tpu_custom_call.1} parent=11 // pred_fallthru
          _
        // Predicated region
        $region97: #{tpu_custom_call.1} parent=11 // pred_check
          %p712 = pneg %p524
        $region98: #{tpu_custom_call.1} parent=11 // pred_check_branch
          %714 = sbr.rel (%p712) target = $region100
        $region99: #{tpu_custom_call.1} parent=11 // pred_region
          _
        $region100: #{tpu_custom_call.1} parent=11 // pred_fallthru
          _
        // Predicated region
        $region101: #{tpu_custom_call.1} parent=11 // pred_check
          %p715 = pneg %p545
        $region102: #{tpu_custom_call.1} parent=11 // pred_check_branch
          %717 = sbr.rel (%p715) target = $region104
        $region103: #{tpu_custom_call.1} parent=11 // pred_region
          _
        $region104: #{tpu_custom_call.1} parent=11 // pred_fallthru
          _
        // Predicated region
        $region105: #{tpu_custom_call.1} parent=11 // pred_check
          %p718 = pneg %p566
        $region106: #{tpu_custom_call.1} parent=11 // pred_check_branch
          %720 = sbr.rel (%p718) target = $region108
        $region107: #{tpu_custom_call.1} parent=11 // pred_region
          _
        $region108: #{tpu_custom_call.1} parent=11 // pred_fallthru
          _
        // Predicated region
        $region109: #{tpu_custom_call.1} parent=11 // pred_check
          %p721 = pneg %p587
        $region110: #{tpu_custom_call.1} parent=11 // pred_check_branch
          %723 = sbr.rel (%p721) target = $region112
        $region111: #{tpu_custom_call.1} parent=11 // pred_region
          _
        $region112: #{tpu_custom_call.1} parent=11 // pred_fallthru
          _
        // Predicated region
        $region113: #{tpu_custom_call.1} parent=11 // pred_check
          %p724 = pneg %p608
        $region114: #{tpu_custom_call.1} parent=11 // pred_check_branch
          %726 = sbr.rel (%p724) target = $region116
        $region115: #{tpu_custom_call.1} parent=11 // pred_region
          _
        $region116: #{tpu_custom_call.1} parent=11 // pred_fallthru
          _
      $region12: #{tpu_custom_call.1} parent=5 // pred_fallthru
        _
      %p727 = scmp.lt.s32.totalorder %s36, 2
      // Predicated region
      $region117: #{tpu_custom_call.1} parent=5 // pred_check
        %p728 = pneg %p727
      $region118: #{tpu_custom_call.1} parent=5 // pred_check_branch
        %730 = sbr.rel (%p728) target = $region120
      $region119: #{tpu_custom_call.1} parent=5 // pred_region
        // Predicated region
        $region121: #{tpu_custom_call.1} parent=119 // pred_check
          %p731 = pneg %p56
        $region122: #{tpu_custom_call.1} parent=119 // pred_check_branch
          %733 = sbr.rel (%p731) target = $region124
        $region123: #{tpu_custom_call.1} parent=119 // pred_region
          %p734 = scmp.lt.s32.totalorder %s36, 1
          %s735 = scalar_select %p734, %s36, 1
          %s736 = smul.addr %s735, 2
          %s737 = smul.addr %s736, 8
          %s738 = scalar_lea.vmem %s0, %s737
        $region124: #{tpu_custom_call.1} parent=119 // pred_fallthru
          _
      $region120: #{tpu_custom_call.1} parent=5 // pred_fallthru
        _
      %p739 = scmp.le.s32.totalorder 1, %s36
      %p740 = scmp.lt.s32.totalorder %s36, 3
      %p741 = pnand %p739, %p740
      %p742 = pneg %p741
      // Predicated region
      $region125: #{tpu_custom_call.1} parent=5 // pred_check
        _
      $region126: #{tpu_custom_call.1} parent=5 // pred_check_branch
        %744 = sbr.rel (%p741) target = $region128
      $region127: #{tpu_custom_call.1} parent=5 // pred_region
        %s745 = ssub.s32 %s36, 1
        %p746 = scmp.lt.s32.totalorder %s41, 1
        %s747 = scalar_select %p746, %s41, 1
        %s748 = smul.addr %s747, 2
        %s749 = smul.addr %s748, 8
        %s750 = scalar_lea.vmem %s0, %s749
        %p751 = pneg %p62
        %p752 = pneg %p59
        %p753 = pneg %p83
        %p754 = pneg %p80
        %p755 = pneg %p104
        %p756 = pneg %p101
        %p757 = pneg %p125
        %p758 = pneg %p122
        %p759 = pneg %p146
        %p760 = pneg %p143
        %p761 = pneg %p167
        %p762 = pneg %p164
        %p763 = pneg %p188
        %p764 = pneg %p185
        %p765 = pneg %p209
        %p766 = pneg %p206
        %p767 = pneg %p230
        %p768 = pneg %p227
        %p769 = pneg %p251
        %p770 = pneg %p248
        %p771 = pneg %p272
        %p772 = pneg %p269
        %p773 = pneg %p293
        %p774 = pneg %p290
        %p775 = pneg %p314
        %p776 = pneg %p311
        %p777 = pneg %p335
        %p778 = pneg %p332
        %p779 = pneg %p356
        %p780 = pneg %p353
        %p781 = pneg %p377
        %p782 = pneg %p374
        %p783 = pneg %p398
        %p784 = pneg %p395
        %p785 = pneg %p419
        %p786 = pneg %p416
        %p787 = pneg %p440
        %p788 = pneg %p437
        %p789 = pneg %p461
        %p790 = pneg %p458
        %p791 = pneg %p482
        %p792 = pneg %p479
        %p793 = pneg %p503
        %p794 = pneg %p500
        %p795 = pneg %p524
        %p796 = pneg %p521
        %p797 = pneg %p545
        %p798 = pneg %p542
        %p799 = pneg %p566
        %p800 = pneg %p563
        %p801 = pneg %p587
        %p802 = pneg %p584
        %p803 = pneg %p608
        %p804 = pneg %p605
        %p805 = pneg %p634
        %p806 = pneg %p631
        %s807 = sand.u32 %s621, 1
        %s808 = scalar_lea.sflag [#allocation4], %s807
        %s809 = sand.u32 %s621, 1
        %s810 = smul.addr %s809, 32
        %s811 = scalar_lea.vmem [#allocation3], %s810
        %p812 = scmp.lt.s32.totalorder %s41, 1
        %s813 = scalar_select %p812, %s41, 1
        %s814 = smul.addr %s813, 2
        %s815 = smul.addr %s814, 8
        %s816 = scalar_lea.vmem %s0, %s815
        %818 = vst [vmem:[#allocation2] sm:$0xff] 0.0
        %819 = vst [vmem:[#allocation2 + $0x8] sm:$0xff] 0.0
        %820 = vst [vmem:[#allocation2 + $0x10] sm:$0xff] 0.0
        %821 = vst [vmem:[#allocation2 + $0x18] sm:$0xff] 0.0
        %822 = vst [vmem:[#allocation2 + $0x20] sm:$0xff] 0.0
        %823 = vst [vmem:[#allocation2 + $0x28] sm:$0xff] 0.0
        %v824 = vld [vmem:[%s816] sm:$0xff]
        %v825 = vld [vmem:[%s816 + $0x8] sm:$0xff]
        %v826 = vld [vmem:[%s1] sm:$0xf]
        %v827 = vld [vmem:[%s1 + $0x4] sm:$0xf]
        %v828 = vld [vmem:[%s1 + $0x8] sm:$0xf]
        %v829 = vld [vmem:[%s1 + $0xc] sm:$0xf]
        %v830 = vld [vmem:[%s2] sm:$0xff]
        %v831 = vld [vmem:[%s2 + $0x8] sm:$0xff]
        %v832 = vld [vmem:[%s2 + $0x10] sm:$0xff]
        %v833 = vld [vmem:[%s2 + $0x18] sm:$0xff]
        %834 = vst [vmem:[#allocation2 + $0x8] sm:$0xff] %v824
        %835 = vst [vmem:[#allocation2 + $0x20] sm:$0xff] %v825
        %v836 = vld [vmem:[#allocation2] sm:$0xff]
        %v837 = vld [vmem:[#allocation2 + $0x8] sm:$0xff]
        %v838 = vld [vmem:[#allocation2 + $0x10] sm:$0xff]
        %v839 = vld [vmem:[#allocation2 + $0x18] sm:$0xff]
        %v840 = vld [vmem:[#allocation2 + $0x20] sm:$0xff]
        %v841 = vld [vmem:[#allocation2 + $0x28] sm:$0xff]
        %846 = vrot.lane.b32.xlu0 %v836, 127
        %v847 = vpop.permute.xlu0 %846
        %848 = vrot.lane.b32.xlu0 %v837, 127
        %v849 = vpop.permute.xlu0 %848
        %850 = vrot.lane.b32.xlu0 %v839, 127
        %v851 = vpop.permute.xlu0 %850
        %852 = vrot.lane.b32.xlu0 %v840, 127
        %v853 = vpop.permute.xlu0 %852
        %vm854 = vcmask 1039360
        %v855 = vsel %vm854, %v847, %v849
        %v856 = vsel %vm854, %v851, %v853
        %861 = vrot.lane.b32.xlu0 %v837, 126
        %v862 = vpop.permute.xlu0 %861
        %863 = vrot.lane.b32.xlu0 %v840, 126
        %v864 = vpop.permute.xlu0 %863
        %869 = vrot.lane.b32.xlu0 %v837, 125
        %v870 = vpop.permute.xlu0 %869
        %871 = vrot.lane.b32.xlu0 %v838, 125
        %v872 = vpop.permute.xlu0 %871
        %873 = vrot.lane.b32.xlu0 %v840, 125
        %v874 = vpop.permute.xlu0 %873
        %875 = vrot.lane.b32.xlu0 %v841, 125
        %v876 = vpop.permute.xlu0 %875
        %vm877 = vcmask 1022976
        %v878 = vsel %vm877, %v870, %v872
        %v879 = vsel %vm877, %v874, %v876
        %884 = vrot.lane.b32.xlu0 %v837, 124
        %v885 = vpop.permute.xlu0 %884
        %886 = vrot.lane.b32.xlu0 %v838, 124
        %v887 = vpop.permute.xlu0 %886
        %888 = vrot.lane.b32.xlu0 %v840, 124
        %v889 = vpop.permute.xlu0 %888
        %890 = vrot.lane.b32.xlu0 %v841, 124
        %v891 = vpop.permute.xlu0 %890
        %vm892 = vcmask 1014784
        %v893 = vsel %vm892, %v885, %v887
        %v894 = vsel %vm892, %v889, %v891
        %v899 = vpack.c.bf16 %v839, %v836
        %v900 = vpack.c.bf16 %v840, %v837
        %v901 = vpack.c.bf16 %v856, %v855
        %v902 = vpack.c.bf16 %v853, %v849
        %v903 = vpack.c.bf16 %v864, %v862
        %v904 = vpack.c.bf16 %v874, %v870
        %v905 = vpack.c.bf16 %v879, %v878
        %v906 = vpack.c.bf16 %v889, %v885
        %v907 = vpack.c.bf16 %v894, %v893
        %909 = vset.pattern.permute.xlu0 0
        %910 = vperm.xlu0 %909, %v830
        %v911 = vpop.permute.xlu0 %910
        %914 = vset.pattern.permute.xlu0 0
        %915 = vperm.xlu0 %914, %v831
        %v916 = vpop.permute.xlu0 %915
        %919 = vset.pattern.permute.xlu0 0
        %920 = vperm.xlu0 %919, %v832
        %v921 = vpop.permute.xlu0 %920
        %924 = vset.pattern.permute.xlu0 0
        %925 = vperm.xlu0 %924, %v833
        %v926 = vpop.permute.xlu0 %925
        %v932 = vunpack.c.l.b16 %v826
        %v933 = vunpack.c.l.b16 %v827
        %v934 = vunpack.c.l.b16 %v828
        %v935 = vunpack.c.l.b16 %v829
        %v936 = vpack.c.b16 %v933, %v932
        %v937 = vpack.c.b16 %v935, %v934
        %947 = vrot.lane.b32.xlu0 %v899, 2
        %v948 = vpop.permute.xlu0 %947
        %949 = vrot.lane.b32.xlu0 %v900, 2
        %v950 = vpop.permute.xlu0 %949
        %951 = vrot.lane.b32.xlu0 %v901, 2
        %v952 = vpop.permute.xlu0 %951
        %953 = vrot.lane.b32.xlu0 %v902, 2
        %v954 = vpop.permute.xlu0 %953
        %955 = vrot.lane.b32.xlu0 %v903, 2
        %v956 = vpop.permute.xlu0 %955
        %957 = vrot.lane.b32.xlu0 %v904, 2
        %v958 = vpop.permute.xlu0 %957
        %959 = vrot.lane.b32.xlu0 %v905, 2
        %v960 = vpop.permute.xlu0 %959
        %961 = vrot.lane.b32.xlu0 %v906, 2
        %v962 = vpop.permute.xlu0 %961
        %963 = vrot.lane.b32.xlu0 %v907, 2
        %v964 = vpop.permute.xlu0 %963
        %vm965 = vcmask 15360
        %v966 = vsel %vm965, %v948, %v950
        %v967 = vsel %vm965, %v952, %v954
        %v968 = vsel %vm965, %v958, %v960
        %v969 = vsel %vm965, %v962, %v964
        %vm975 = vcmask 654336
        %v977 = vsel %vm975, %v936, 0
        %v980 = vsel %vm975, %v937, 0
        %982 = vmatprep.subr.bf16.mxu0 0
        %983 = vmatpush1.bf16.msra.mxu0 0
        %984 = vmatprep.subr.bf16.mxu0 0
        %985 = vmatpush1.bf16.msra.mxu0 0
        %986 = vmatprep.subr.bf16.mxu0 0
        %987 = vmatpush1.bf16.msra.mxu0 0
        %988 = vmatprep.subr.bf16.mxu0 0
        %989 = vmatpush1.bf16.msra.mxu0 %v969
        %990 = vmatprep.subr.bf16.mxu0 0
        %991 = vmatpush1.bf16.msra.mxu0 %v968
        %992 = vmatprep.subr.bf16.mxu0 0
        %993 = vmatpush1.bf16.msra.mxu0 %v956
        %994 = vmatprep.subr.bf16.mxu0 0
        %995 = vmatpush1.bf16.msra.mxu0 %v967
        %996 = vmatprep.subr.bf16.mxu0 0
        %997 = vmatpush1.bf16.msra.mxu0 %v966
        %998 = vmatprep.subr.bf16.mxu0 0
        %999 = vmatpush2.bf16.msra.mxu0 0
        %1000 = vmatprep.subr.bf16.mxu0 0
        %1001 = vmatpush2.bf16.msra.mxu0 0
        %1002 = vmatprep.subr.bf16.mxu0 0
        %1003 = vmatpush2.bf16.msra.mxu0 0
        %1004 = vmatprep.subr.bf16.mxu0 0
        %1005 = vmatpush2.bf16.msra.mxu0 0
        %1006 = vmatprep.subr.bf16.mxu0 0
        %1007 = vmatpush2.bf16.msra.mxu0 0
        %1008 = vmatprep.subr.bf16.mxu0 0
        %1009 = vmatpush2.bf16.msra.mxu0 0
        %1010 = vmatprep.subr.bf16.mxu0 0
        %1011 = vmatpush2.bf16.msra.mxu0 0
        %1012 = vmatprep.subr.bf16.mxu0 0
        %1013 = vmatpush2.bf16.msra.mxu0 0
        %1014 = vmatprep.mubr.bf16.mxu0 0
        %1015 = vmatmul.mubr.bf16.gmra.mxu0 %v977
        %v1016 = vpop.f32.mrf.mxu0
        %v1017 = vadd.f32 %v911, %v1016
        %v1018 = vpop.f32.mrf.mxu0
        %v1019 = vpop.f32.mrf.mxu0
        %v1020 = vadd.f32 %v916, %v1019
        %v1021 = vpop.f32.mrf.mxu0
        %1022 = vmatprep.mubr.bf16.mxu0 0
        %1023 = vmatmul.mubr.bf16.gmra.mxu0 %v980
        %v1024 = vpop.f32.mrf.mxu0
        %v1025 = vadd.f32 %v921, %v1024
        %v1026 = vpop.f32.mrf.mxu0
        %v1027 = vpop.f32.mrf.mxu0
        %v1028 = vadd.f32 %v926, %v1027
        %v1029 = vpop.f32.mrf.mxu0
        %1030 = vdwg.mxu0
        %v1031 = vld [vmem:[%s3] sm:$0xf]
        %v1032 = vld [vmem:[%s3 + $0x4] sm:$0xf]
        %v1033 = vld [vmem:[%s4] sm:$0xff]
        %v1034 = vld [vmem:[%s4 + $0x8] sm:$0xff]
        %v1035 = vpack.c.bf16 %v1020, %v1017
        %v1036 = vpack.c.bf16 %v1028, %v1025
        %1038 = vset.pattern.permute.xlu0 0
        %1039 = vperm.xlu0 %1038, %v1033
        %v1040 = vpop.permute.xlu0 %1039
        %1043 = vset.pattern.permute.xlu0 0
        %1044 = vperm.xlu0 %1043, %v1034
        %v1045 = vpop.permute.xlu0 %1044
        %v1049 = vunpack.c.l.b16 %v1031
        %v1050 = vunpack.c.l.b16 %v1032
        %v1051 = vpack.c.b16 %v1050, %v1049
        %vm1052 = vcmask 261120
        %v1054 = vsel %vm1052, %v1051, 0
        %1056 = vmatprep.subr.bf16.mxu0 0
        %1057 = vmatpush1.bf16.msra.mxu0 0
        %1058 = vmatprep.subr.bf16.mxu0 0
        %1059 = vmatpush1.bf16.msra.mxu0 0
        %1060 = vmatprep.subr.bf16.mxu0 0
        %1061 = vmatpush1.bf16.msra.mxu0 0
        %1062 = vmatprep.subr.bf16.mxu0 0
        %1063 = vmatpush1.bf16.msra.mxu0 0
        %1064 = vmatprep.subr.bf16.mxu0 0
        %1065 = vmatpush1.bf16.msra.mxu0 0
        %1066 = vmatprep.subr.bf16.mxu0 0
        %1067 = vmatpush1.bf16.msra.mxu0 0
        %1068 = vmatprep.subr.bf16.mxu0 0
        %1069 = vmatpush1.bf16.msra.mxu0 %v1036
        %1070 = vmatprep.subr.bf16.mxu0 0
        %1071 = vmatpush1.bf16.msra.mxu0 %v1035
        %1072 = vmatprep.subr.bf16.mxu0 0
        %1073 = vmatpush2.bf16.msra.mxu0 0
        %1074 = vmatprep.subr.bf16.mxu0 0
        %1075 = vmatpush2.bf16.msra.mxu0 0
        %1076 = vmatprep.subr.bf16.mxu0 0
        %1077 = vmatpush2.bf16.msra.mxu0 0
        %1078 = vmatprep.subr.bf16.mxu0 0
        %1079 = vmatpush2.bf16.msra.mxu0 0
        %1080 = vmatprep.subr.bf16.mxu0 0
        %1081 = vmatpush2.bf16.msra.mxu0 0
        %1082 = vmatprep.subr.bf16.mxu0 0
        %1083 = vmatpush2.bf16.msra.mxu0 0
        %1084 = vmatprep.subr.bf16.mxu0 0
        %1085 = vmatpush2.bf16.msra.mxu0 0
        %1086 = vmatprep.subr.bf16.mxu0 0
        %1087 = vmatpush2.bf16.msra.mxu0 0
        %1088 = vmatprep.mubr.bf16.mxu0 0
        %1089 = vmatmul.mubr.bf16.gmra.mxu0 %v1054
        %v1090 = vpop.f32.mrf.mxu0
        %v1091 = vadd.f32 %v1040, %v1090
        %v1092 = vpop.f32.mrf.mxu0
        %v1093 = vpop.f32.mrf.mxu0
        %v1094 = vadd.f32 %v1045, %v1093
        %v1095 = vpop.f32.mrf.mxu0
        %1096 = vdwg.mxu0
        %v1097 = vmax.f32 %v1091, 0.0
        %v1098 = vmax.f32 %v1094, 0.0
        %v1099 = vld [vmem:[%s5] sm:$0xf]
        %v1100 = vld [vmem:[%s5 + $0x4] sm:$0xf]
        %v1101 = vld [vmem:[%s6] sm:$0xff]
        %v1102 = vld [vmem:[%s6 + $0x8] sm:$0xff]
        %1103 = vst [vmem:[#allocation2 + $0x8] sm:$0xff] %v1097
        %1104 = vst [vmem:[#allocation2 + $0x20] sm:$0xff] %v1098
        %v1105 = vld [vmem:[#allocation2] sm:$0xff]
        %v1106 = vld [vmem:[#allocation2 + $0x8] sm:$0xff]
        %v1107 = vld [vmem:[#allocation2 + $0x10] sm:$0xff]
        %v1108 = vld [vmem:[#allocation2 + $0x18] sm:$0xff]
        %v1109 = vld [vmem:[#allocation2 + $0x20] sm:$0xff]
        %v1110 = vld [vmem:[#allocation2 + $0x28] sm:$0xff]
        %1115 = vrot.lane.b32.xlu0 %v1105, 126
        %v1116 = vpop.permute.xlu0 %1115
        %1117 = vrot.lane.b32.xlu0 %v1106, 126
        %v1118 = vpop.permute.xlu0 %1117
        %1119 = vrot.lane.b32.xlu0 %v1108, 126
        %v1120 = vpop.permute.xlu0 %1119
        %1121 = vrot.lane.b32.xlu0 %v1109, 126
        %v1122 = vpop.permute.xlu0 %1121
        %vm1123 = vcmask 1031168
        %v1124 = vsel %vm1123, %v1116, %v1118
        %v1125 = vsel %vm1123, %v1120, %v1122
        %1130 = vrot.lane.b32.xlu0 %v1106, 124
        %v1131 = vpop.permute.xlu0 %1130
        %1132 = vrot.lane.b32.xlu0 %v1109, 124
        %v1133 = vpop.permute.xlu0 %1132
        %1138 = vrot.lane.b32.xlu0 %v1106, 122
        %v1139 = vpop.permute.xlu0 %1138
        %1140 = vrot.lane.b32.xlu0 %v1107, 122
        %v1141 = vpop.permute.xlu0 %1140
        %1142 = vrot.lane.b32.xlu0 %v1109, 122
        %v1143 = vpop.permute.xlu0 %1142
        %1144 = vrot.lane.b32.xlu0 %v1110, 122
        %v1145 = vpop.permute.xlu0 %1144
        %vm1146 = vcmask 998400
        %v1147 = vsel %vm1146, %v1139, %v1141
        %v1148 = vsel %vm1146, %v1143, %v1145
        %1153 = vrot.lane.b32.xlu0 %v1106, 120
        %v1154 = vpop.permute.xlu0 %1153
        %1155 = vrot.lane.b32.xlu0 %v1107, 120
        %v1156 = vpop.permute.xlu0 %1155
        %1157 = vrot.lane.b32.xlu0 %v1109, 120
        %v1158 = vpop.permute.xlu0 %1157
        %1159 = vrot.lane.b32.xlu0 %v1110, 120
        %v1160 = vpop.permute.xlu0 %1159
        %vm1161 = vcmask 982016
        %v1162 = vsel %vm1161, %v1154, %v1156
        %v1163 = vsel %vm1161, %v1158, %v1160
        %v1168 = vpack.c.bf16 %v1108, %v1105
        %v1169 = vpack.c.bf16 %v1109, %v1106
        %v1170 = vpack.c.bf16 %v1125, %v1124
        %v1171 = vpack.c.bf16 %v1122, %v1118
        %v1172 = vpack.c.bf16 %v1133, %v1131
        %v1173 = vpack.c.bf16 %v1143, %v1139
        %v1174 = vpack.c.bf16 %v1148, %v1147
        %v1175 = vpack.c.bf16 %v1158, %v1154
        %v1176 = vpack.c.bf16 %v1163, %v1162
        %1178 = vset.pattern.permute.xlu0 0
        %1179 = vperm.xlu0 %1178, %v1101
        %v1180 = vpop.permute.xlu0 %1179
        %1183 = vset.pattern.permute.xlu0 0
        %1184 = vperm.xlu0 %1183, %v1102
        %v1185 = vpop.permute.xlu0 %1184
        %v1189 = vunpack.c.l.b16 %v1099
        %v1190 = vunpack.c.l.b16 %v1100
        %v1191 = vpack.c.b16 %v1190, %v1189
        %1201 = vrot.lane.b32.xlu0 %v1168, 4
        %v1202 = vpop.permute.xlu0 %1201
        %1203 = vrot.lane.b32.xlu0 %v1169, 4
        %v1204 = vpop.permute.xlu0 %1203
        %1205 = vrot.lane.b32.xlu0 %v1170, 4
        %v1206 = vpop.permute.xlu0 %1205
        %1207 = vrot.lane.b32.xlu0 %v1171, 4
        %v1208 = vpop.permute.xlu0 %1207
        %1209 = vrot.lane.b32.xlu0 %v1172, 4
        %v1210 = vpop.permute.xlu0 %1209
        %1211 = vrot.lane.b32.xlu0 %v1173, 4
        %v1212 = vpop.permute.xlu0 %1211
        %1213 = vrot.lane.b32.xlu0 %v1174, 4
        %v1214 = vpop.permute.xlu0 %1213
        %1215 = vrot.lane.b32.xlu0 %v1175, 4
        %v1216 = vpop.permute.xlu0 %1215
        %1217 = vrot.lane.b32.xlu0 %v1176, 4
        %v1218 = vpop.permute.xlu0 %1217
        %vm1219 = vcmask 31744
        %v1220 = vsel %vm1219, %v1202, %v1204
        %v1221 = vsel %vm1219, %v1206, %v1208
        %v1222 = vsel %vm1219, %v1212, %v1214
        %v1223 = vsel %vm1219, %v1216, %v1218
        %v1230 = vsel %vm975, %v1191, 0
        %1232 = vmatprep.subr.bf16.mxu0 0
        %1233 = vmatpush1.bf16.msra.mxu0 0
        %1234 = vmatprep.subr.bf16.mxu0 0
        %1235 = vmatpush1.bf16.msra.mxu0 0
        %1236 = vmatprep.subr.bf16.mxu0 0
        %1237 = vmatpush1.bf16.msra.mxu0 0
        %1238 = vmatprep.subr.bf16.mxu0 0
        %1239 = vmatpush1.bf16.msra.mxu0 %v1223
        %1240 = vmatprep.subr.bf16.mxu0 0
        %1241 = vmatpush1.bf16.msra.mxu0 %v1222
        %1242 = vmatprep.subr.bf16.mxu0 0
        %1243 = vmatpush1.bf16.msra.mxu0 %v1210
        %1244 = vmatprep.subr.bf16.mxu0 0
        %1245 = vmatpush1.bf16.msra.mxu0 %v1221
        %1246 = vmatprep.subr.bf16.mxu0 0
        %1247 = vmatpush1.bf16.msra.mxu0 %v1220
        %1248 = vmatprep.subr.bf16.mxu0 0
        %1249 = vmatpush2.bf16.msra.mxu0 0
        %1250 = vmatprep.subr.bf16.mxu0 0
        %1251 = vmatpush2.bf16.msra.mxu0 0
        %1252 = vmatprep.subr.bf16.mxu0 0
        %1253 = vmatpush2.bf16.msra.mxu0 0
        %1254 = vmatprep.subr.bf16.mxu0 0
        %1255 = vmatpush2.bf16.msra.mxu0 0
        %1256 = vmatprep.subr.bf16.mxu0 0
        %1257 = vmatpush2.bf16.msra.mxu0 0
        %1258 = vmatprep.subr.bf16.mxu0 0
        %1259 = vmatpush2.bf16.msra.mxu0 0
        %1260 = vmatprep.subr.bf16.mxu0 0
        %1261 = vmatpush2.bf16.msra.mxu0 0
        %1262 = vmatprep.subr.bf16.mxu0 0
        %1263 = vmatpush2.bf16.msra.mxu0 0
        %1264 = vmatprep.mubr.bf16.mxu0 0
        %1265 = vmatmul.mubr.bf16.gmra.mxu0 %v1230
        %v1266 = vpop.f32.mrf.mxu0
        %v1267 = vadd.f32 %v1180, %v1266
        %v1268 = vpop.f32.mrf.mxu0
        %v1269 = vpop.f32.mrf.mxu0
        %v1270 = vadd.f32 %v1185, %v1269
        %v1271 = vpop.f32.mrf.mxu0
        %1272 = vdwg.mxu0
        %v1273 = vmax.f32 %v1267, 0.0
        %v1274 = vmax.f32 %v1270, 0.0
        %v1275 = vld [vmem:[%s7] sm:$0xf]
        %v1276 = vld [vmem:[%s7 + $0x4] sm:$0xf]
        %v1277 = vld [vmem:[%s7 + $0x8] sm:$0xf]
        %v1278 = vld [vmem:[%s7 + $0xc] sm:$0xf]
        %v1279 = vld [vmem:[%s8] sm:$0xff]
        %v1280 = vld [vmem:[%s8 + $0x8] sm:$0xff]
        %v1281 = vld [vmem:[%s8 + $0x10] sm:$0xff]
        %v1282 = vld [vmem:[%s8 + $0x18] sm:$0xff]
        %v1283 = vpack.c.bf16 %v1274, %v1273
        %1285 = vset.pattern.permute.xlu0 0
        %1286 = vperm.xlu0 %1285, %v1279
        %v1287 = vpop.permute.xlu0 %1286
        %1290 = vset.pattern.permute.xlu0 0
        %1291 = vperm.xlu0 %1290, %v1280
        %v1292 = vpop.permute.xlu0 %1291
        %1295 = vset.pattern.permute.xlu0 0
        %1296 = vperm.xlu0 %1295, %v1281
        %v1297 = vpop.permute.xlu0 %1296
        %1300 = vset.pattern.permute.xlu0 0
        %1301 = vperm.xlu0 %1300, %v1282
        %v1302 = vpop.permute.xlu0 %1301
        %v1308 = vunpack.c.l.b16 %v1275
        %v1309 = vunpack.c.l.b16 %v1276
        %v1310 = vunpack.c.l.b16 %v1277
        %v1311 = vunpack.c.l.b16 %v1278
        %v1312 = vpack.c.b16 %v1309, %v1308
        %v1313 = vpack.c.b16 %v1311, %v1310
        %vm1314 = vcmask 130048
        %v1316 = vsel %vm1314, %v1312, 0
        %v1319 = vsel %vm1314, %v1313, 0
        %1321 = vmatprep.subr.bf16.mxu0 0
        %1322 = vmatpush1.bf16.msra.mxu0 0
        %1323 = vmatprep.subr.bf16.mxu0 0
        %1324 = vmatpush1.bf16.msra.mxu0 0
        %1325 = vmatprep.subr.bf16.mxu0 0
        %1326 = vmatpush1.bf16.msra.mxu0 0
        %1327 = vmatprep.subr.bf16.mxu0 0
        %1328 = vmatpush1.bf16.msra.mxu0 0
        %1329 = vmatprep.subr.bf16.mxu0 0
        %1330 = vmatpush1.bf16.msra.mxu0 0
        %1331 = vmatprep.subr.bf16.mxu0 0
        %1332 = vmatpush1.bf16.msra.mxu0 0
        %1333 = vmatprep.subr.bf16.mxu0 0
        %1334 = vmatpush1.bf16.msra.mxu0 0
        %1335 = vmatprep.subr.bf16.mxu0 0
        %1336 = vmatpush1.bf16.msra.mxu0 %v1283
        %1337 = vmatprep.subr.bf16.mxu0 0
        %1338 = vmatpush2.bf16.msra.mxu0 0
        %1339 = vmatprep.subr.bf16.mxu0 0
        %1340 = vmatpush2.bf16.msra.mxu0 0
        %1341 = vmatprep.subr.bf16.mxu0 0
        %1342 = vmatpush2.bf16.msra.mxu0 0
        %1343 = vmatprep.subr.bf16.mxu0 0
        %1344 = vmatpush2.bf16.msra.mxu0 0
        %1345 = vmatprep.subr.bf16.mxu0 0
        %1346 = vmatpush2.bf16.msra.mxu0 0
        %1347 = vmatprep.subr.bf16.mxu0 0
        %1348 = vmatpush2.bf16.msra.mxu0 0
        %1349 = vmatprep.subr.bf16.mxu0 0
        %1350 = vmatpush2.bf16.msra.mxu0 0
        %1351 = vmatprep.subr.bf16.mxu0 0
        %1352 = vmatpush2.bf16.msra.mxu0 0
        %1353 = vmatprep.mubr.bf16.mxu0 0
        %1354 = vmatmul.mubr.bf16.gmra.mxu0 %v1316
        %v1355 = vpop.f32.mrf.mxu0
        %v1356 = vadd.f32 %v1287, %v1355
        %v1357 = vpop.f32.mrf.mxu0
        %v1358 = vpop.f32.mrf.mxu0
        %v1359 = vadd.f32 %v1292, %v1358
        %v1360 = vpop.f32.mrf.mxu0
        %1361 = vmatprep.mubr.bf16.mxu0 0
        %1362 = vmatmul.mubr.bf16.gmra.mxu0 %v1319
        %v1363 = vpop.f32.mrf.mxu0
        %v1364 = vadd.f32 %v1297, %v1363
        %v1365 = vpop.f32.mrf.mxu0
        %v1366 = vpop.f32.mrf.mxu0
        %v1367 = vadd.f32 %v1302, %v1366
        %v1368 = vpop.f32.mrf.mxu0
        %1369 = vdwg.mxu0
        %v1370 = vmax.f32 %v1356, 0.0
        %v1371 = vmax.f32 %v1359, 0.0
        %v1372 = vmax.f32 %v1364, 0.0
        %v1373 = vmax.f32 %v1367, 0.0
        %v1374 = vadd.f32 %v1370, %v1017
        %v1375 = vadd.f32 %v1371, %v1020
        %v1376 = vadd.f32 %v1372, %v1025
        %v1377 = vadd.f32 %v1373, %v1028
        %v1378 = vld [vmem:[%s9] sm:$0xf]
        %v1379 = vld [vmem:[%s10] sm:$0xff]
        %v1380 = vpack.c.bf16 %v1375, %v1374
        %v1381 = vpack.c.bf16 %v1377, %v1376
        %1383 = vset.pattern.permute.xlu0 0
        %1384 = vperm.xlu0 %1383, %v1379
        %v1385 = vpop.permute.xlu0 %1384
        %v1388 = vsel %vm1052, %v1378, 0
        %1390 = vmatprep.subr.bf16.mxu0 0
        %1391 = vmatpush1.bf16.msra.mxu0 0
        %1392 = vmatprep.subr.bf16.mxu0 0
        %1393 = vmatpush1.bf16.msra.mxu0 0
        %1394 = vmatprep.subr.bf16.mxu0 0
        %1395 = vmatpush1.bf16.msra.mxu0 0
        %1396 = vmatprep.subr.bf16.mxu0 0
        %1397 = vmatpush1.bf16.msra.mxu0 0
        %1398 = vmatprep.subr.bf16.mxu0 0
        %1399 = vmatpush1.bf16.msra.mxu0 0
        %1400 = vmatprep.subr.bf16.mxu0 0
        %1401 = vmatpush1.bf16.msra.mxu0 0
        %1402 = vmatprep.subr.bf16.mxu0 0
        %1403 = vmatpush1.bf16.msra.mxu0 %v1381
        %1404 = vmatprep.subr.bf16.mxu0 0
        %1405 = vmatpush1.bf16.msra.mxu0 %v1380
        %1406 = vmatprep.subr.bf16.mxu0 0
        %1407 = vmatpush2.bf16.msra.mxu0 0
        %1408 = vmatprep.subr.bf16.mxu0 0
        %1409 = vmatpush2.bf16.msra.mxu0 0
        %1410 = vmatprep.subr.bf16.mxu0 0
        %1411 = vmatpush2.bf16.msra.mxu0 0
        %1412 = vmatprep.subr.bf16.mxu0 0
        %1413 = vmatpush2.bf16.msra.mxu0 0
        %1414 = vmatprep.subr.bf16.mxu0 0
        %1415 = vmatpush2.bf16.msra.mxu0 0
        %1416 = vmatprep.subr.bf16.mxu0 0
        %1417 = vmatpush2.bf16.msra.mxu0 0
        %1418 = vmatprep.subr.bf16.mxu0 0
        %1419 = vmatpush2.bf16.msra.mxu0 0
        %1420 = vmatprep.subr.bf16.mxu0 0
        %1421 = vmatpush2.bf16.msra.mxu0 0
        %1422 = vmatprep.mubr.bf16.mxu0 0
        %1423 = vmatmul.mubr.bf16.gmra.mxu0 %v1388
        %v1424 = vpop.f32.mrf.mxu0
        %v1425 = vadd.f32 %v1385, %v1424
        %v1426 = vpop.f32.mrf.mxu0
        %v1427 = vpop.f32.mrf.mxu0
        %v1428 = vpop.f32.mrf.mxu0
        %1429 = vdwg.mxu0
        %v1430 = vmax.f32 %v1425, 0.0
        %v1431 = vld [vmem:[%s11] sm:$0xf]
        %v1432 = vld [vmem:[%s12] sm:$0xff]
        %1433 = vst [vmem:[#allocation2 + $0x8] sm:$0xff] %v1430
        %v1434 = vld [vmem:[#allocation2] sm:$0xff]
        %v1435 = vld [vmem:[#allocation2 + $0x8] sm:$0xff]
        %v1436 = vld [vmem:[#allocation2 + $0x10] sm:$0xff]
        %1439 = vrot.lane.b32.xlu0 %v1434, 124
        %v1440 = vpop.permute.xlu0 %1439
        %1441 = vrot.lane.b32.xlu0 %v1435, 124
        %v1442 = vpop.permute.xlu0 %1441
        %v1443 = vsel %vm892, %v1440, %v1442
        %1446 = vrot.lane.b32.xlu0 %v1435, 120
        %v1447 = vpop.permute.xlu0 %1446
        %1450 = vrot.lane.b32.xlu0 %v1435, 116
        %v1451 = vpop.permute.xlu0 %1450
        %1452 = vrot.lane.b32.xlu0 %v1436, 116
        %v1453 = vpop.permute.xlu0 %1452
        %vm1454 = vcmask 949248
        %v1455 = vsel %vm1454, %v1451, %v1453
        %1458 = vrot.lane.b32.xlu0 %v1435, 112
        %v1459 = vpop.permute.xlu0 %1458
        %1460 = vrot.lane.b32.xlu0 %v1436, 112
        %v1461 = vpop.permute.xlu0 %1460
        %vm1462 = vcmask 916480
        %v1463 = vsel %vm1462, %v1459, %v1461
        %v1466 = vpack.c.bf16 %v1443, %v1434
        %v1467 = vpack.c.bf16 %v1442, %v1435
        %v1468 = vpack.c.bf16 %v1451, %v1447
        %v1469 = vpack.c.bf16 %v1455, %v1447
        %v1470 = vpack.c.bf16 %v1459, %v1459
        %v1471 = vpack.c.bf16 %v1463, %v1463
        %1473 = vset.pattern.permute.xlu0 0
        %1474 = vperm.xlu0 %1473, %v1432
        %v1475 = vpop.permute.xlu0 %1474
        %1483 = vrot.lane.b32.xlu0 %v1466, 8
        %v1484 = vpop.permute.xlu0 %1483
        %1485 = vrot.lane.b32.xlu0 %v1467, 8
        %v1486 = vpop.permute.xlu0 %1485
        %1487 = vrot.lane.b32.xlu0 %v1468, 8
        %v1488 = vpop.permute.xlu0 %1487
        %1489 = vrot.lane.b32.xlu0 %v1469, 8
        %v1490 = vpop.permute.xlu0 %1489
        %1491 = vrot.lane.b32.xlu0 %v1470, 8
        %v1492 = vpop.permute.xlu0 %1491
        %1493 = vrot.lane.b32.xlu0 %v1471, 8
        %v1494 = vpop.permute.xlu0 %1493
        %vm1495 = vcmask 64512
        %v1496 = vsel %vm1495, %v1484, %v1486
        %v1497 = vsel %vm1495, %v1488, %v1490
        %v1498 = vsel %vm1495, %v1492, %v1494
        %vm1501 = vcmask 326656
        %v1503 = vsel %vm1501, %v1431, 0
        %vm1505 = vcmask 1043456
        %v1507 = vsel %vm1505, %v1498, 0
        %1509 = vmatprep.subr.bf16.mxu0 0
        %1510 = vmatpush1.bf16.msra.mxu0 0
        %1511 = vmatprep.subr.bf16.mxu0 0
        %1512 = vmatpush1.bf16.msra.mxu0 0
        %1513 = vmatprep.subr.bf16.mxu0 0
        %1514 = vmatpush1.bf16.msra.mxu0 0
        %1515 = vmatprep.subr.bf16.mxu0 0
        %1516 = vmatpush1.bf16.msra.mxu0 0
        %1517 = vmatprep.subr.bf16.mxu0 0
        %1518 = vmatpush1.bf16.msra.mxu0 0
        %1519 = vmatprep.subr.bf16.mxu0 0
        %1520 = vmatpush1.bf16.msra.mxu0 %v1507
        %1521 = vmatprep.subr.bf16.mxu0 0
        %1522 = vmatpush1.bf16.msra.mxu0 %v1497
        %1523 = vmatprep.subr.bf16.mxu0 0
        %1524 = vmatpush1.bf16.msra.mxu0 %v1496
        %1525 = vmatprep.subr.bf16.mxu0 0
        %1526 = vmatpush2.bf16.msra.mxu0 0
        %1527 = vmatprep.subr.bf16.mxu0 0
        %1528 = vmatpush2.bf16.msra.mxu0 0
        %1529 = vmatprep.subr.bf16.mxu0 0
        %1530 = vmatpush2.bf16.msra.mxu0 0
        %1531 = vmatprep.subr.bf16.mxu0 0
        %1532 = vmatpush2.bf16.msra.mxu0 0
        %1533 = vmatprep.subr.bf16.mxu0 0
        %1534 = vmatpush2.bf16.msra.mxu0 0
        %1535 = vmatprep.subr.bf16.mxu0 0
        %1536 = vmatpush2.bf16.msra.mxu0 0
        %1537 = vmatprep.subr.bf16.mxu0 0
        %1538 = vmatpush2.bf16.msra.mxu0 0
        %1539 = vmatprep.subr.bf16.mxu0 0
        %1540 = vmatpush2.bf16.msra.mxu0 0
        %1541 = vmatprep.mubr.bf16.mxu0 0
        %1542 = vmatmul.mubr.bf16.gmra.mxu0 %v1503
        %v1543 = vpop.f32.mrf.mxu0
        %v1544 = vadd.f32 %v1475, %v1543
        %v1545 = vpop.f32.mrf.mxu0
        %v1546 = vpop.f32.mrf.mxu0
        %v1547 = vpop.f32.mrf.mxu0
        %1548 = vdwg.mxu0
        %v1549 = vmax.f32 %v1544, 0.0
        %v1550 = vld [vmem:[%s13] sm:$0xf]
        %v1551 = vld [vmem:[%s13 + $0x4] sm:$0xf]
        %v1552 = vld [vmem:[%s13 + $0x8] sm:$0xf]
        %v1553 = vld [vmem:[%s13 + $0xc] sm:$0xf]
        %v1554 = vld [vmem:[%s14] sm:$0xff]
        %v1555 = vld [vmem:[%s14 + $0x8] sm:$0xff]
        %v1556 = vld [vmem:[%s14 + $0x10] sm:$0xff]
        %v1557 = vld [vmem:[%s14 + $0x18] sm:$0xff]
        %v1558 = vpack.c.bf16 %v1549, %v1549
        %1560 = vset.pattern.permute.xlu0 0
        %1561 = vperm.xlu0 %1560, %v1554
        %v1562 = vpop.permute.xlu0 %1561
        %1565 = vset.pattern.permute.xlu0 0
        %1566 = vperm.xlu0 %1565, %v1555
        %v1567 = vpop.permute.xlu0 %1566
        %1570 = vset.pattern.permute.xlu0 0
        %1571 = vperm.xlu0 %1570, %v1556
        %v1572 = vpop.permute.xlu0 %1571
        %1575 = vset.pattern.permute.xlu0 0
        %1576 = vperm.xlu0 %1575, %v1557
        %v1577 = vpop.permute.xlu0 %1576
        %v1583 = vunpack.c.l.b16 %v1550
        %v1584 = vunpack.c.l.b16 %v1551
        %v1585 = vunpack.c.l.b16 %v1552
        %v1586 = vunpack.c.l.b16 %v1553
        %v1587 = vpack.c.b16 %v1584, %v1583
        %v1588 = vpack.c.b16 %v1586, %v1585
        %vm1589 = vcmask 64512
        %v1591 = vsel %vm1589, %v1587, 0
        %v1594 = vsel %vm1589, %v1588, 0
        %v1597 = vsel %vm1505, %v1558, 0
        %1599 = vmatprep.subr.bf16.mxu0 0
        %1600 = vmatpush1.bf16.msra.mxu0 0
        %1601 = vmatprep.subr.bf16.mxu0 0
        %1602 = vmatpush1.bf16.msra.mxu0 0
        %1603 = vmatprep.subr.bf16.mxu0 0
        %1604 = vmatpush1.bf16.msra.mxu0 0
        %1605 = vmatprep.subr.bf16.mxu0 0
        %1606 = vmatpush1.bf16.msra.mxu0 0
        %1607 = vmatprep.subr.bf16.mxu0 0
        %1608 = vmatpush1.bf16.msra.mxu0 0
        %1609 = vmatprep.subr.bf16.mxu0 0
        %1610 = vmatpush1.bf16.msra.mxu0 0
        %1611 = vmatprep.subr.bf16.mxu0 0
        %1612 = vmatpush1.bf16.msra.mxu0 0
        %1613 = vmatprep.subr.bf16.mxu0 0
        %1614 = vmatpush1.bf16.msra.mxu0 %v1597
        %1615 = vmatprep.subr.bf16.mxu0 0
        %1616 = vmatpush2.bf16.msra.mxu0 0
        %1617 = vmatprep.subr.bf16.mxu0 0
        %1618 = vmatpush2.bf16.msra.mxu0 0
        %1619 = vmatprep.subr.bf16.mxu0 0
        %1620 = vmatpush2.bf16.msra.mxu0 0
        %1621 = vmatprep.subr.bf16.mxu0 0
        %1622 = vmatpush2.bf16.msra.mxu0 0
        %1623 = vmatprep.subr.bf16.mxu0 0
        %1624 = vmatpush2.bf16.msra.mxu0 0
        %1625 = vmatprep.subr.bf16.mxu0 0
        %1626 = vmatpush2.bf16.msra.mxu0 0
        %1627 = vmatprep.subr.bf16.mxu0 0
        %1628 = vmatpush2.bf16.msra.mxu0 0
        %1629 = vmatprep.subr.bf16.mxu0 0
        %1630 = vmatpush2.bf16.msra.mxu0 0
        %1631 = vmatprep.mubr.bf16.mxu0 0
        %1632 = vmatmul.mubr.bf16.gmra.mxu0 %v1591
        %v1633 = vpop.f32.mrf.mxu0
        %v1634 = vadd.f32 %v1562, %v1633
        %v1635 = vpop.f32.mrf.mxu0
        %v1636 = vpop.f32.mrf.mxu0
        %v1637 = vadd.f32 %v1567, %v1636
        %v1638 = vpop.f32.mrf.mxu0
        %1639 = vmatprep.mubr.bf16.mxu0 0
        %1640 = vmatmul.mubr.bf16.gmra.mxu0 %v1594
        %v1641 = vpop.f32.mrf.mxu0
        %v1642 = vadd.f32 %v1572, %v1641
        %v1643 = vpop.f32.mrf.mxu0
        %v1644 = vpop.f32.mrf.mxu0
        %v1645 = vadd.f32 %v1577, %v1644
        %v1646 = vpop.f32.mrf.mxu0
        %1647 = vdwg.mxu0
        %v1648 = vmax.f32 %v1634, 0.0
        %v1649 = vmax.f32 %v1637, 0.0
        %v1650 = vmax.f32 %v1642, 0.0
        %v1651 = vmax.f32 %v1645, 0.0
        %v1652 = vadd.f32 %v1648, %v1374
        %v1653 = vadd.f32 %v1649, %v1375
        %v1654 = vadd.f32 %v1650, %v1376
        %v1655 = vadd.f32 %v1651, %v1377
        %v1656 = vld [vmem:[%s15] sm:$0xf]
        %v1657 = vld [vmem:[%s15 + $0x4] sm:$0xf]
        %v1658 = vld [vmem:[%s16] sm:$0xff]
        %v1659 = vld [vmem:[%s16 + $0x8] sm:$0xff]
        %v1660 = vpack.c.bf16 %v1653, %v1652
        %v1661 = vpack.c.bf16 %v1655, %v1654
        %1663 = vset.pattern.permute.xlu0 0
        %1664 = vperm.xlu0 %1663, %v1658
        %v1665 = vpop.permute.xlu0 %1664
        %1668 = vset.pattern.permute.xlu0 0
        %1669 = vperm.xlu0 %1668, %v1659
        %v1670 = vpop.permute.xlu0 %1669
        %v1674 = vunpack.c.l.b16 %v1656
        %v1675 = vunpack.c.l.b16 %v1657
        %v1676 = vpack.c.b16 %v1675, %v1674
        %v1678 = vsel %vm1052, %v1676, 0
        %1680 = vmatprep.subr.bf16.mxu0 0
        %1681 = vmatpush1.bf16.msra.mxu0 0
        %1682 = vmatprep.subr.bf16.mxu0 0
        %1683 = vmatpush1.bf16.msra.mxu0 0
        %1684 = vmatprep.subr.bf16.mxu0 0
        %1685 = vmatpush1.bf16.msra.mxu0 0
        %1686 = vmatprep.subr.bf16.mxu0 0
        %1687 = vmatpush1.bf16.msra.mxu0 0
        %1688 = vmatprep.subr.bf16.mxu0 0
        %1689 = vmatpush1.bf16.msra.mxu0 0
        %1690 = vmatprep.subr.bf16.mxu0 0
        %1691 = vmatpush1.bf16.msra.mxu0 0
        %1692 = vmatprep.subr.bf16.mxu0 0
        %1693 = vmatpush1.bf16.msra.mxu0 %v1661
        %1694 = vmatprep.subr.bf16.mxu0 0
        %1695 = vmatpush1.bf16.msra.mxu0 %v1660
        %1696 = vmatprep.subr.bf16.mxu0 0
        %1697 = vmatpush2.bf16.msra.mxu0 0
        %1698 = vmatprep.subr.bf16.mxu0 0
        %1699 = vmatpush2.bf16.msra.mxu0 0
        %1700 = vmatprep.subr.bf16.mxu0 0
        %1701 = vmatpush2.bf16.msra.mxu0 0
        %1702 = vmatprep.subr.bf16.mxu0 0
        %1703 = vmatpush2.bf16.msra.mxu0 0
        %1704 = vmatprep.subr.bf16.mxu0 0
        %1705 = vmatpush2.bf16.msra.mxu0 0
        %1706 = vmatprep.subr.bf16.mxu0 0
        %1707 = vmatpush2.bf16.msra.mxu0 0
        %1708 = vmatprep.subr.bf16.mxu0 0
        %1709 = vmatpush2.bf16.msra.mxu0 0
        %1710 = vmatprep.subr.bf16.mxu0 0
        %1711 = vmatpush2.bf16.msra.mxu0 0
        %1712 = vmatprep.mubr.bf16.mxu0 0
        %1713 = vmatmul.mubr.bf16.gmra.mxu0 %v1678
        %v1714 = vpop.f32.mrf.mxu0
        %v1715 = vadd.f32 %v1665, %v1714
        %v1716 = vpop.f32.mrf.mxu0
        %v1717 = vpop.f32.mrf.mxu0
        %v1718 = vadd.f32 %v1670, %v1717
        %v1719 = vpop.f32.mrf.mxu0
        %1720 = vdwg.mxu0
        %v1721 = vmax.f32 %v1715, 0.0
        %v1722 = vmax.f32 %v1718, 0.0
        %v1723 = vld [vmem:[%s17] sm:$0xf]
        %v1724 = vld [vmem:[%s17 + $0x4] sm:$0xf]
        %v1725 = vld [vmem:[%s18] sm:$0xff]
        %v1726 = vld [vmem:[%s18 + $0x8] sm:$0xff]
        %1727 = vst [vmem:[#allocation2 + $0x8] sm:$0xff] %v1721
        %1728 = vst [vmem:[#allocation2 + $0x20] sm:$0xff] %v1722
        %v1729 = vld [vmem:[#allocation2] sm:$0xff]
        %v1730 = vld [vmem:[#allocation2 + $0x8] sm:$0xff]
        %v1731 = vld [vmem:[#allocation2 + $0x10] sm:$0xff]
        %v1732 = vld [vmem:[#allocation2 + $0x18] sm:$0xff]
        %v1733 = vld [vmem:[#allocation2 + $0x20] sm:$0xff]
        %v1734 = vld [vmem:[#allocation2 + $0x28] sm:$0xff]
        %1739 = vrot.lane.b32.xlu0 %v1729, 126
        %v1740 = vpop.permute.xlu0 %1739
        %1741 = vrot.lane.b32.xlu0 %v1730, 126
        %v1742 = vpop.permute.xlu0 %1741
        %1743 = vrot.lane.b32.xlu0 %v1732, 126
        %v1744 = vpop.permute.xlu0 %1743
        %1745 = vrot.lane.b32.xlu0 %v1733, 126
        %v1746 = vpop.permute.xlu0 %1745
        %v1747 = vsel %vm1123, %v1740, %v1742
        %v1748 = vsel %vm1123, %v1744, %v1746
        %1753 = vrot.lane.b32.xlu0 %v1730, 124
        %v1754 = vpop.permute.xlu0 %1753
        %1755 = vrot.lane.b32.xlu0 %v1733, 124
        %v1756 = vpop.permute.xlu0 %1755
        %1761 = vrot.lane.b32.xlu0 %v1730, 122
        %v1762 = vpop.permute.xlu0 %1761
        %1763 = vrot.lane.b32.xlu0 %v1731, 122
        %v1764 = vpop.permute.xlu0 %1763
        %1765 = vrot.lane.b32.xlu0 %v1733, 122
        %v1766 = vpop.permute.xlu0 %1765
        %1767 = vrot.lane.b32.xlu0 %v1734, 122
        %v1768 = vpop.permute.xlu0 %1767
        %v1769 = vsel %vm1146, %v1762, %v1764
        %v1770 = vsel %vm1146, %v1766, %v1768
        %1775 = vrot.lane.b32.xlu0 %v1730, 120
        %v1776 = vpop.permute.xlu0 %1775
        %1777 = vrot.lane.b32.xlu0 %v1731, 120
        %v1778 = vpop.permute.xlu0 %1777
        %1779 = vrot.lane.b32.xlu0 %v1733, 120
        %v1780 = vpop.permute.xlu0 %1779
        %1781 = vrot.lane.b32.xlu0 %v1734, 120
        %v1782 = vpop.permute.xlu0 %1781
        %v1783 = vsel %vm1161, %v1776, %v1778
        %v1784 = vsel %vm1161, %v1780, %v1782
        %v1789 = vpack.c.bf16 %v1732, %v1729
        %v1790 = vpack.c.bf16 %v1733, %v1730
        %v1791 = vpack.c.bf16 %v1748, %v1747
        %v1792 = vpack.c.bf16 %v1746, %v1742
        %v1793 = vpack.c.bf16 %v1756, %v1754
        %v1794 = vpack.c.bf16 %v1766, %v1762
        %v1795 = vpack.c.bf16 %v1770, %v1769
        %v1796 = vpack.c.bf16 %v1780, %v1776
        %v1797 = vpack.c.bf16 %v1784, %v1783
        %1799 = vset.pattern.permute.xlu0 0
        %1800 = vperm.xlu0 %1799, %v1725
        %v1801 = vpop.permute.xlu0 %1800
        %1804 = vset.pattern.permute.xlu0 0
        %1805 = vperm.xlu0 %1804, %v1726
        %v1806 = vpop.permute.xlu0 %1805
        %v1810 = vunpack.c.l.b16 %v1723
        %v1811 = vunpack.c.l.b16 %v1724
        %v1812 = vpack.c.b16 %v1811, %v1810
        %1822 = vrot.lane.b32.xlu0 %v1789, 4
        %v1823 = vpop.permute.xlu0 %1822
        %1824 = vrot.lane.b32.xlu0 %v1790, 4
        %v1825 = vpop.permute.xlu0 %1824
        %1826 = vrot.lane.b32.xlu0 %v1791, 4
        %v1827 = vpop.permute.xlu0 %1826
        %1828 = vrot.lane.b32.xlu0 %v1792, 4
        %v1829 = vpop.permute.xlu0 %1828
        %1830 = vrot.lane.b32.xlu0 %v1793, 4
        %v1831 = vpop.permute.xlu0 %1830
        %1832 = vrot.lane.b32.xlu0 %v1794, 4
        %v1833 = vpop.permute.xlu0 %1832
        %1834 = vrot.lane.b32.xlu0 %v1795, 4
        %v1835 = vpop.permute.xlu0 %1834
        %1836 = vrot.lane.b32.xlu0 %v1796, 4
        %v1837 = vpop.permute.xlu0 %1836
        %1838 = vrot.lane.b32.xlu0 %v1797, 4
        %v1839 = vpop.permute.xlu0 %1838
        %v1840 = vsel %vm1219, %v1823, %v1825
        %v1841 = vsel %vm1219, %v1827, %v1829
        %v1842 = vsel %vm1219, %v1833, %v1835
        %v1843 = vsel %vm1219, %v1837, %v1839
        %v1850 = vsel %vm975, %v1812, 0
        %1852 = vmatprep.subr.bf16.mxu0 0
        %1853 = vmatpush1.bf16.msra.mxu0 0
        %1854 = vmatprep.subr.bf16.mxu0 0
        %1855 = vmatpush1.bf16.msra.mxu0 0
        %1856 = vmatprep.subr.bf16.mxu0 0
        %1857 = vmatpush1.bf16.msra.mxu0 0
        %1858 = vmatprep.subr.bf16.mxu0 0
        %1859 = vmatpush1.bf16.msra.mxu0 %v1843
        %1860 = vmatprep.subr.bf16.mxu0 0
        %1861 = vmatpush1.bf16.msra.mxu0 %v1842
        %1862 = vmatprep.subr.bf16.mxu0 0
        %1863 = vmatpush1.bf16.msra.mxu0 %v1831
        %1864 = vmatprep.subr.bf16.mxu0 0
        %1865 = vmatpush1.bf16.msra.mxu0 %v1841
        %1866 = vmatprep.subr.bf16.mxu0 0
        %1867 = vmatpush1.bf16.msra.mxu0 %v1840
        %1868 = vmatprep.subr.bf16.mxu0 0
        %1869 = vmatpush2.bf16.msra.mxu0 0
        %1870 = vmatprep.subr.bf16.mxu0 0
        %1871 = vmatpush2.bf16.msra.mxu0 0
        %1872 = vmatprep.subr.bf16.mxu0 0
        %1873 = vmatpush2.bf16.msra.mxu0 0
        %1874 = vmatprep.subr.bf16.mxu0 0
        %1875 = vmatpush2.bf16.msra.mxu0 0
        %1876 = vmatprep.subr.bf16.mxu0 0
        %1877 = vmatpush2.bf16.msra.mxu0 0
        %1878 = vmatprep.subr.bf16.mxu0 0
        %1879 = vmatpush2.bf16.msra.mxu0 0
        %1880 = vmatprep.subr.bf16.mxu0 0
        %1881 = vmatpush2.bf16.msra.mxu0 0
        %1882 = vmatprep.subr.bf16.mxu0 0
        %1883 = vmatpush2.bf16.msra.mxu0 0
        %1884 = vmatprep.mubr.bf16.mxu0 0
        %1885 = vmatmul.mubr.bf16.gmra.mxu0 %v1850
        %v1886 = vpop.f32.mrf.mxu0
        %v1887 = vadd.f32 %v1801, %v1886
        %v1888 = vpop.f32.mrf.mxu0
        %v1889 = vpop.f32.mrf.mxu0
        %v1890 = vadd.f32 %v1806, %v1889
        %v1891 = vpop.f32.mrf.mxu0
        %1892 = vdwg.mxu0
        %v1893 = vmax.f32 %v1887, 0.0
        %v1894 = vmax.f32 %v1890, 0.0
        %v1895 = vld [vmem:[%s19] sm:$0xf]
        %v1896 = vld [vmem:[%s19 + $0x4] sm:$0xf]
        %v1897 = vld [vmem:[%s19 + $0x8] sm:$0xf]
        %v1898 = vld [vmem:[%s19 + $0xc] sm:$0xf]
        %v1899 = vld [vmem:[%s20] sm:$0xff]
        %v1900 = vld [vmem:[%s20 + $0x8] sm:$0xff]
        %v1901 = vld [vmem:[%s20 + $0x10] sm:$0xff]
        %v1902 = vld [vmem:[%s20 + $0x18] sm:$0xff]
        %v1903 = vpack.c.bf16 %v1894, %v1893
        %1905 = vset.pattern.permute.xlu0 0
        %1906 = vperm.xlu0 %1905, %v1899
        %v1907 = vpop.permute.xlu0 %1906
        %1910 = vset.pattern.permute.xlu0 0
        %1911 = vperm.xlu0 %1910, %v1900
        %v1912 = vpop.permute.xlu0 %1911
        %1915 = vset.pattern.permute.xlu0 0
        %1916 = vperm.xlu0 %1915, %v1901
        %v1917 = vpop.permute.xlu0 %1916
        %1920 = vset.pattern.permute.xlu0 0
        %1921 = vperm.xlu0 %1920, %v1902
        %v1922 = vpop.permute.xlu0 %1921
        %v1928 = vunpack.c.l.b16 %v1895
        %v1929 = vunpack.c.l.b16 %v1896
        %v1930 = vunpack.c.l.b16 %v1897
        %v1931 = vunpack.c.l.b16 %v1898
        %v1932 = vpack.c.b16 %v1929, %v1928
        %v1933 = vpack.c.b16 %v1931, %v1930
        %v1935 = vsel %vm1314, %v1932, 0
        %v1938 = vsel %vm1314, %v1933, 0
        %1940 = vmatprep.subr.bf16.mxu0 0
        %1941 = vmatpush1.bf16.msra.mxu0 0
        %1942 = vmatprep.subr.bf16.mxu0 0
        %1943 = vmatpush1.bf16.msra.mxu0 0
        %1944 = vmatprep.subr.bf16.mxu0 0
        %1945 = vmatpush1.bf16.msra.mxu0 0
        %1946 = vmatprep.subr.bf16.mxu0 0
        %1947 = vmatpush1.bf16.msra.mxu0 0
        %1948 = vmatprep.subr.bf16.mxu0 0
        %1949 = vmatpush1.bf16.msra.mxu0 0
        %1950 = vmatprep.subr.bf16.mxu0 0
        %1951 = vmatpush1.bf16.msra.mxu0 0
        %1952 = vmatprep.subr.bf16.mxu0 0
        %1953 = vmatpush1.bf16.msra.mxu0 0
        %1954 = vmatprep.subr.bf16.mxu0 0
        %1955 = vmatpush1.bf16.msra.mxu0 %v1903
        %1956 = vmatprep.subr.bf16.mxu0 0
        %1957 = vmatpush2.bf16.msra.mxu0 0
        %1958 = vmatprep.subr.bf16.mxu0 0
        %1959 = vmatpush2.bf16.msra.mxu0 0
        %1960 = vmatprep.subr.bf16.mxu0 0
        %1961 = vmatpush2.bf16.msra.mxu0 0
        %1962 = vmatprep.subr.bf16.mxu0 0
        %1963 = vmatpush2.bf16.msra.mxu0 0
        %1964 = vmatprep.subr.bf16.mxu0 0
        %1965 = vmatpush2.bf16.msra.mxu0 0
        %1966 = vmatprep.subr.bf16.mxu0 0
        %1967 = vmatpush2.bf16.msra.mxu0 0
        %1968 = vmatprep.subr.bf16.mxu0 0
        %1969 = vmatpush2.bf16.msra.mxu0 0
        %1970 = vmatprep.subr.bf16.mxu0 0
        %1971 = vmatpush2.bf16.msra.mxu0 0
        %1972 = vmatprep.mubr.bf16.mxu0 0
        %1973 = vmatmul.mubr.bf16.gmra.mxu0 %v1935
        %v1974 = vpop.f32.mrf.mxu0
        %v1975 = vadd.f32 %v1907, %v1974
        %v1976 = vpop.f32.mrf.mxu0
        %v1977 = vpop.f32.mrf.mxu0
        %v1978 = vadd.f32 %v1912, %v1977
        %v1979 = vpop.f32.mrf.mxu0
        %1980 = vmatprep.mubr.bf16.mxu0 0
        %1981 = vmatmul.mubr.bf16.gmra.mxu0 %v1938
        %v1982 = vpop.f32.mrf.mxu0
        %v1983 = vadd.f32 %v1917, %v1982
        %v1984 = vpop.f32.mrf.mxu0
        %v1985 = vpop.f32.mrf.mxu0
        %v1986 = vadd.f32 %v1922, %v1985
        %v1987 = vpop.f32.mrf.mxu0
        %1988 = vdwg.mxu0
        %v1989 = vmax.f32 %v1975, 0.0
        %v1990 = vmax.f32 %v1978, 0.0
        %v1991 = vmax.f32 %v1983, 0.0
        %v1992 = vmax.f32 %v1986, 0.0
        %v1993 = vadd.f32 %v1989, %v1652
        %v1994 = vadd.f32 %v1990, %v1653
        %v1995 = vadd.f32 %v1991, %v1654
        %v1996 = vadd.f32 %v1992, %v1655
        %v1997 = vld [vmem:[%s21] sm:$0xf]
        %v1998 = vld [vmem:[%s21 + $0x4] sm:$0xf]
        %v1999 = vld [vmem:[%s22] sm:$0xff]
        %v2000 = vld [vmem:[%s22 + $0x8] sm:$0xff]
        %v2001 = vpack.c.bf16 %v1994, %v1993
        %v2002 = vpack.c.bf16 %v1996, %v1995
        %2004 = vset.pattern.permute.xlu0 0
        %2005 = vperm.xlu0 %2004, %v1999
        %v2006 = vpop.permute.xlu0 %2005
        %2009 = vset.pattern.permute.xlu0 0
        %2010 = vperm.xlu0 %2009, %v2000
        %v2011 = vpop.permute.xlu0 %2010
        %v2015 = vunpack.c.l.b16 %v1997
        %v2016 = vunpack.c.l.b16 %v1998
        %v2017 = vpack.c.b16 %v2016, %v2015
        %v2019 = vsel %vm1052, %v2017, 0
        %2021 = vmatprep.subr.bf16.mxu0 0
        %2022 = vmatpush1.bf16.msra.mxu0 0
        %2023 = vmatprep.subr.bf16.mxu0 0
        %2024 = vmatpush1.bf16.msra.mxu0 0
        %2025 = vmatprep.subr.bf16.mxu0 0
        %2026 = vmatpush1.bf16.msra.mxu0 0
        %2027 = vmatprep.subr.bf16.mxu0 0
        %2028 = vmatpush1.bf16.msra.mxu0 0
        %2029 = vmatprep.subr.bf16.mxu0 0
        %2030 = vmatpush1.bf16.msra.mxu0 0
        %2031 = vmatprep.subr.bf16.mxu0 0
        %2032 = vmatpush1.bf16.msra.mxu0 0
        %2033 = vmatprep.subr.bf16.mxu0 0
        %2034 = vmatpush1.bf16.msra.mxu0 %v2002
        %2035 = vmatprep.subr.bf16.mxu0 0
        %2036 = vmatpush1.bf16.msra.mxu0 %v2001
        %2037 = vmatprep.subr.bf16.mxu0 0
        %2038 = vmatpush2.bf16.msra.mxu0 0
        %2039 = vmatprep.subr.bf16.mxu0 0
        %2040 = vmatpush2.bf16.msra.mxu0 0
        %2041 = vmatprep.subr.bf16.mxu0 0
        %2042 = vmatpush2.bf16.msra.mxu0 0
        %2043 = vmatprep.subr.bf16.mxu0 0
        %2044 = vmatpush2.bf16.msra.mxu0 0
        %2045 = vmatprep.subr.bf16.mxu0 0
        %2046 = vmatpush2.bf16.msra.mxu0 0
        %2047 = vmatprep.subr.bf16.mxu0 0
        %2048 = vmatpush2.bf16.msra.mxu0 0
        %2049 = vmatprep.subr.bf16.mxu0 0
        %2050 = vmatpush2.bf16.msra.mxu0 0
        %2051 = vmatprep.subr.bf16.mxu0 0
        %2052 = vmatpush2.bf16.msra.mxu0 0
        %2053 = vmatprep.mubr.bf16.mxu0 0
        %2054 = vmatmul.mubr.bf16.gmra.mxu0 %v2019
        %v2055 = vpop.f32.mrf.mxu0
        %v2056 = vadd.f32 %v2006, %v2055
        %v2057 = vpop.f32.mrf.mxu0
        %v2058 = vpop.f32.mrf.mxu0
        %v2059 = vadd.f32 %v2011, %v2058
        %v2060 = vpop.f32.mrf.mxu0
        %2061 = vdwg.mxu0
        %v2062 = vmax.f32 %v2056, 0.0
        %v2063 = vmax.f32 %v2059, 0.0
        %v2064 = vld [vmem:[%s23] sm:$0xf]
        %v2065 = vld [vmem:[%s23 + $0x4] sm:$0xf]
        %v2066 = vld [vmem:[%s24] sm:$0xff]
        %v2067 = vld [vmem:[%s24 + $0x8] sm:$0xff]
        %2068 = vst [vmem:[#allocation2 + $0x8] sm:$0xff] %v2062
        %2069 = vst [vmem:[#allocation2 + $0x20] sm:$0xff] %v2063
        %v2070 = vld [vmem:[#allocation2] sm:$0xff]
        %v2071 = vld [vmem:[#allocation2 + $0x8] sm:$0xff]
        %v2072 = vld [vmem:[#allocation2 + $0x10] sm:$0xff]
        %v2073 = vld [vmem:[#allocation2 + $0x18] sm:$0xff]
        %v2074 = vld [vmem:[#allocation2 + $0x20] sm:$0xff]
        %v2075 = vld [vmem:[#allocation2 + $0x28] sm:$0xff]
        %2080 = vrot.lane.b32.xlu0 %v2070, 124
        %v2081 = vpop.permute.xlu0 %2080
        %2082 = vrot.lane.b32.xlu0 %v2071, 124
        %v2083 = vpop.permute.xlu0 %2082
        %2084 = vrot.lane.b32.xlu0 %v2073, 124
        %v2085 = vpop.permute.xlu0 %2084
        %2086 = vrot.lane.b32.xlu0 %v2074, 124
        %v2087 = vpop.permute.xlu0 %2086
        %v2088 = vsel %vm892, %v2081, %v2083
        %v2089 = vsel %vm892, %v2085, %v2087
        %2094 = vrot.lane.b32.xlu0 %v2071, 120
        %v2095 = vpop.permute.xlu0 %2094
        %2096 = vrot.lane.b32.xlu0 %v2074, 120
        %v2097 = vpop.permute.xlu0 %2096
        %2102 = vrot.lane.b32.xlu0 %v2071, 116
        %v2103 = vpop.permute.xlu0 %2102
        %2104 = vrot.lane.b32.xlu0 %v2072, 116
        %v2105 = vpop.permute.xlu0 %2104
        %2106 = vrot.lane.b32.xlu0 %v2074, 116
        %v2107 = vpop.permute.xlu0 %2106
        %2108 = vrot.lane.b32.xlu0 %v2075, 116
        %v2109 = vpop.permute.xlu0 %2108
        %v2110 = vsel %vm1454, %v2103, %v2105
        %v2111 = vsel %vm1454, %v2107, %v2109
        %2116 = vrot.lane.b32.xlu0 %v2071, 112
        %v2117 = vpop.permute.xlu0 %2116
        %2118 = vrot.lane.b32.xlu0 %v2072, 112
        %v2119 = vpop.permute.xlu0 %2118
        %2120 = vrot.lane.b32.xlu0 %v2074, 112
        %v2121 = vpop.permute.xlu0 %2120
        %2122 = vrot.lane.b32.xlu0 %v2075, 112
        %v2123 = vpop.permute.xlu0 %2122
        %v2124 = vsel %vm1462, %v2117, %v2119
        %v2125 = vsel %vm1462, %v2121, %v2123
        %v2130 = vpack.c.bf16 %v2073, %v2070
        %v2131 = vpack.c.bf16 %v2074, %v2071
        %v2132 = vpack.c.bf16 %v2089, %v2088
        %v2133 = vpack.c.bf16 %v2087, %v2083
        %v2134 = vpack.c.bf16 %v2097, %v2095
        %v2135 = vpack.c.bf16 %v2107, %v2103
        %v2136 = vpack.c.bf16 %v2111, %v2110
        %v2137 = vpack.c.bf16 %v2121, %v2117
        %v2138 = vpack.c.bf16 %v2125, %v2124
        %2140 = vset.pattern.permute.xlu0 0
        %2141 = vperm.xlu0 %2140, %v2066
        %v2142 = vpop.permute.xlu0 %2141
        %2145 = vset.pattern.permute.xlu0 0
        %2146 = vperm.xlu0 %2145, %v2067
        %v2147 = vpop.permute.xlu0 %2146
        %v2151 = vunpack.c.l.b16 %v2064
        %v2152 = vunpack.c.l.b16 %v2065
        %v2153 = vpack.c.b16 %v2152, %v2151
        %2163 = vrot.lane.b32.xlu0 %v2130, 8
        %v2164 = vpop.permute.xlu0 %2163
        %2165 = vrot.lane.b32.xlu0 %v2131, 8
        %v2166 = vpop.permute.xlu0 %2165
        %2167 = vrot.lane.b32.xlu0 %v2132, 8
        %v2168 = vpop.permute.xlu0 %2167
        %2169 = vrot.lane.b32.xlu0 %v2133, 8
        %v2170 = vpop.permute.xlu0 %2169
        %2171 = vrot.lane.b32.xlu0 %v2134, 8
        %v2172 = vpop.permute.xlu0 %2171
        %2173 = vrot.lane.b32.xlu0 %v2135, 8
        %v2174 = vpop.permute.xlu0 %2173
        %2175 = vrot.lane.b32.xlu0 %v2136, 8
        %v2176 = vpop.permute.xlu0 %2175
        %2177 = vrot.lane.b32.xlu0 %v2137, 8
        %v2178 = vpop.permute.xlu0 %2177
        %2179 = vrot.lane.b32.xlu0 %v2138, 8
        %v2180 = vpop.permute.xlu0 %2179
        %v2181 = vsel %vm1495, %v2164, %v2166
        %v2182 = vsel %vm1495, %v2168, %v2170
        %v2183 = vsel %vm1495, %v2174, %v2176
        %v2184 = vsel %vm1495, %v2178, %v2180
        %v2191 = vsel %vm975, %v2153, 0
        %2193 = vmatprep.subr.bf16.mxu0 0
        %2194 = vmatpush1.bf16.msra.mxu0 0
        %2195 = vmatprep.subr.bf16.mxu0 0
        %2196 = vmatpush1.bf16.msra.mxu0 0
        %2197 = vmatprep.subr.bf16.mxu0 0
        %2198 = vmatpush1.bf16.msra.mxu0 0
        %2199 = vmatprep.subr.bf16.mxu0 0
        %2200 = vmatpush1.bf16.msra.mxu0 %v2184
        %2201 = vmatprep.subr.bf16.mxu0 0
        %2202 = vmatpush1.bf16.msra.mxu0 %v2183
        %2203 = vmatprep.subr.bf16.mxu0 0
        %2204 = vmatpush1.bf16.msra.mxu0 %v2172
        %2205 = vmatprep.subr.bf16.mxu0 0
        %2206 = vmatpush1.bf16.msra.mxu0 %v2182
        %2207 = vmatprep.subr.bf16.mxu0 0
        %2208 = vmatpush1.bf16.msra.mxu0 %v2181
        %2209 = vmatprep.subr.bf16.mxu0 0
        %2210 = vmatpush2.bf16.msra.mxu0 0
        %2211 = vmatprep.subr.bf16.mxu0 0
        %2212 = vmatpush2.bf16.msra.mxu0 0
        %2213 = vmatprep.subr.bf16.mxu0 0
        %2214 = vmatpush2.bf16.msra.mxu0 0
        %2215 = vmatprep.subr.bf16.mxu0 0
        %2216 = vmatpush2.bf16.msra.mxu0 0
        %2217 = vmatprep.subr.bf16.mxu0 0
        %2218 = vmatpush2.bf16.msra.mxu0 0
        %2219 = vmatprep.subr.bf16.mxu0 0
        %2220 = vmatpush2.bf16.msra.mxu0 0
        %2221 = vmatprep.subr.bf16.mxu0 0
        %2222 = vmatpush2.bf16.msra.mxu0 0
        %2223 = vmatprep.subr.bf16.mxu0 0
        %2224 = vmatpush2.bf16.msra.mxu0 0
        %2225 = vmatprep.mubr.bf16.mxu0 0
        %2226 = vmatmul.mubr.bf16.gmra.mxu0 %v2191
        %v2227 = vpop.f32.mrf.mxu0
        %v2228 = vadd.f32 %v2142, %v2227
        %v2229 = vpop.f32.mrf.mxu0
        %v2230 = vpop.f32.mrf.mxu0
        %v2231 = vadd.f32 %v2147, %v2230
        %v2232 = vpop.f32.mrf.mxu0
        %2233 = vdwg.mxu0
        %v2234 = vmax.f32 %v2228, 0.0
        %v2235 = vmax.f32 %v2231, 0.0
        %v2236 = vld [vmem:[%s25] sm:$0xf]
        %v2237 = vld [vmem:[%s25 + $0x4] sm:$0xf]
        %v2238 = vld [vmem:[%s25 + $0x8] sm:$0xf]
        %v2239 = vld [vmem:[%s25 + $0xc] sm:$0xf]
        %v2240 = vld [vmem:[%s26] sm:$0xff]
        %v2241 = vld [vmem:[%s26 + $0x8] sm:$0xff]
        %v2242 = vld [vmem:[%s26 + $0x10] sm:$0xff]
        %v2243 = vld [vmem:[%s26 + $0x18] sm:$0xff]
        %v2244 = vpack.c.bf16 %v2235, %v2234
        %2246 = vset.pattern.permute.xlu0 0
        %2247 = vperm.xlu0 %2246, %v2240
        %v2248 = vpop.permute.xlu0 %2247
        %2251 = vset.pattern.permute.xlu0 0
        %2252 = vperm.xlu0 %2251, %v2241
        %v2253 = vpop.permute.xlu0 %2252
        %2256 = vset.pattern.permute.xlu0 0
        %2257 = vperm.xlu0 %2256, %v2242
        %v2258 = vpop.permute.xlu0 %2257
        %2261 = vset.pattern.permute.xlu0 0
        %2262 = vperm.xlu0 %2261, %v2243
        %v2263 = vpop.permute.xlu0 %2262
        %v2269 = vunpack.c.l.b16 %v2236
        %v2270 = vunpack.c.l.b16 %v2237
        %v2271 = vunpack.c.l.b16 %v2238
        %v2272 = vunpack.c.l.b16 %v2239
        %v2273 = vpack.c.b16 %v2270, %v2269
        %v2274 = vpack.c.b16 %v2272, %v2271
        %v2276 = vsel %vm1314, %v2273, 0
        %v2279 = vsel %vm1314, %v2274, 0
        %2281 = vmatprep.subr.bf16.mxu0 0
        %2282 = vmatpush1.bf16.msra.mxu0 0
        %2283 = vmatprep.subr.bf16.mxu0 0
        %2284 = vmatpush1.bf16.msra.mxu0 0
        %2285 = vmatprep.subr.bf16.mxu0 0
        %2286 = vmatpush1.bf16.msra.mxu0 0
        %2287 = vmatprep.subr.bf16.mxu0 0
        %2288 = vmatpush1.bf16.msra.mxu0 0
        %2289 = vmatprep.subr.bf16.mxu0 0
        %2290 = vmatpush1.bf16.msra.mxu0 0
        %2291 = vmatprep.subr.bf16.mxu0 0
        %2292 = vmatpush1.bf16.msra.mxu0 0
        %2293 = vmatprep.subr.bf16.mxu0 0
        %2294 = vmatpush1.bf16.msra.mxu0 0
        %2295 = vmatprep.subr.bf16.mxu0 0
        %2296 = vmatpush1.bf16.msra.mxu0 %v2244
        %2297 = vmatprep.subr.bf16.mxu0 0
        %2298 = vmatpush2.bf16.msra.mxu0 0
        %2299 = vmatprep.subr.bf16.mxu0 0
        %2300 = vmatpush2.bf16.msra.mxu0 0
        %2301 = vmatprep.subr.bf16.mxu0 0
        %2302 = vmatpush2.bf16.msra.mxu0 0
        %2303 = vmatprep.subr.bf16.mxu0 0
        %2304 = vmatpush2.bf16.msra.mxu0 0
        %2305 = vmatprep.subr.bf16.mxu0 0
        %2306 = vmatpush2.bf16.msra.mxu0 0
        %2307 = vmatprep.subr.bf16.mxu0 0
        %2308 = vmatpush2.bf16.msra.mxu0 0
        %2309 = vmatprep.subr.bf16.mxu0 0
        %2310 = vmatpush2.bf16.msra.mxu0 0
        %2311 = vmatprep.subr.bf16.mxu0 0
        %2312 = vmatpush2.bf16.msra.mxu0 0
        %2313 = vmatprep.mubr.bf16.mxu0 0
        %2314 = vmatmul.mubr.bf16.gmra.mxu0 %v2276
        %v2315 = vpop.f32.mrf.mxu0
        %v2316 = vadd.f32 %v2248, %v2315
        %v2317 = vpop.f32.mrf.mxu0
        %v2318 = vpop.f32.mrf.mxu0
        %v2319 = vadd.f32 %v2253, %v2318
        %v2320 = vpop.f32.mrf.mxu0
        %2321 = vmatprep.mubr.bf16.mxu0 0
        %2322 = vmatmul.mubr.bf16.gmra.mxu0 %v2279
        %v2323 = vpop.f32.mrf.mxu0
        %v2324 = vadd.f32 %v2258, %v2323
        %v2325 = vpop.f32.mrf.mxu0
        %v2326 = vpop.f32.mrf.mxu0
        %v2327 = vadd.f32 %v2263, %v2326
        %v2328 = vpop.f32.mrf.mxu0
        %2329 = vdwg.mxu0
        %v2330 = vmax.f32 %v2316, 0.0
        %v2331 = vmax.f32 %v2319, 0.0
        %v2332 = vmax.f32 %v2324, 0.0
        %v2333 = vmax.f32 %v2327, 0.0
        %v2334 = vadd.f32 %v2330, %v1993
        %v2335 = vadd.f32 %v2331, %v1994
        %v2336 = vadd.f32 %v2332, %v1995
        %v2337 = vadd.f32 %v2333, %v1996
        %2338 = vst [vmem:[%s811] sm:$0xff] %v2334
        %2339 = vst [vmem:[%s811 + $0x8] sm:$0xff] %v2335
        %2340 = vst [vmem:[%s811 + $0x10] sm:$0xff] %v2336
        %2341 = vst [vmem:[%s811 + $0x18] sm:$0xff] %v2337
        %s2342 = sand.u32 %s621, 1
        %s2343 = scalar_lea.sflag [#allocation4], %s2342
        %s2344 = sand.u32 %s621, 1
        %s2345 = smul.addr %s2344, 32
        %s2346 = scalar_lea.vmem [#allocation3], %s2345
        // Predicated region
        $region129: #{tpu_custom_call.1} parent=127 // pred_check
          %p2347 = pneg %p631
        $region130: #{tpu_custom_call.1} parent=127 // pred_check_branch
          %2349 = sbr.rel (%p2347) target = $region132
        $region131: #{tpu_custom_call.1} parent=127 // pred_region
          %s2351 = ssub.s32 512, 512
          %2352 = vsyncadd %s2343, %s2351
          %s2353 = smul.addr %s41, 4
          %s2354 = smul.addr %s2353, 128
          %s2355 = scalar_lea.hbm %s27, %s2354
          %s2356 = sshll.u32 %s2346, 4
          %s2357 = int_to_ptr.vmem [resolvable:$true] %s2356
          %2362 = dma.vmem_to_hbm [thread:$0]  %s2357, 512, %s2355, %s2343, 128, 128, 8
        $region132: #{tpu_custom_call.1} parent=127 // pred_fallthru
          _
      $region128: #{tpu_custom_call.1} parent=5 // pred_fallthru
        _
      %p2363 = scmp.le.s32.totalorder 2, %s36
      // Predicated region
      $region133: #{tpu_custom_call.1} parent=5 // pred_check
        %p2364 = pneg %p2363
      $region134: #{tpu_custom_call.1} parent=5 // pred_check_branch
        %2366 = sbr.rel (%p2364) target = $region136
      $region135: #{tpu_custom_call.1} parent=5 // pred_region
        %s2367 = ssub.s32 %s36, 2
        // Predicated region
        $region137: #{tpu_custom_call.1} parent=135 // pred_check
          %p2368 = pneg %p637
        $region138: #{tpu_custom_call.1} parent=135 // pred_check_branch
          %2370 = sbr.rel (%p2368) target = $region140
        $region139: #{tpu_custom_call.1} parent=135 // pred_region
          %s2371 = sand.u32 %s622, 1
          %s2372 = scalar_lea.sflag [#allocation4], %s2371
          %s2373 = sand.u32 %s622, 1
          %s2374 = smul.addr %s2373, 32
          %s2375 = scalar_lea.vmem [#allocation3], %s2374
          %2376 = dma.done %s2372, 512
        $region140: #{tpu_custom_call.1} parent=135 // pred_fallthru
          _
      $region136: #{tpu_custom_call.1} parent=5 // pred_fallthru
        _
    $region6: #{tpu_custom_call.1} parent=1 // loop_footer
      %s40 = sadd.s32 1, %s36
    $region7: #{tpu_custom_call.1} parent=1 // loop_footer_branch
      %35 = sbr.rel target = $region3
    $region8: #{tpu_custom_call.1} parent=1 // loop_exit
      _
    %2377 = vsyncpa [#allocation4], 1
    %s2378 = scalar_lea.sflag [#allocation4], 1
    %2379 = vsyncpa %s2378, 1

</llo_original>
